<compile_context>
chip_gen: v7x
topology: tpu7x:2x2x1
jax: 0.10.0
libtpu: 0.0.40
codegen_flags: <defaults>
</compile_context>

<pallas_src>
import functools
import math

import jax
import jax.numpy as jnp
from jax.experimental import pallas as pl
from jax.experimental.pallas import tpu as pltpu

N_CLASSES = 23
N_PAD = 128  # lane-dense classifier output width (sliced to 23 in the wrapper)


# ------------------------------ fused kernel -------------------------------

def _encoder_kernel(emb_ref, bias_ref, embg_ref, embb_ref,
                    wqkv_ref, bqkv_ref, wo_ref, bo_ref, ln1g_ref, ln1b_ref,
                    w1_ref, fb1_ref, w2_ref, fb2_ref, ln2g_ref, ln2b_ref,
                    clsw_ref, clsb_ref,
                    logits_ref,
                    h_ref,
                    *, B, S, heads, D, num_layers):
    """One grid step == one transformer layer; h carried in VMEM scratch."""
    l = pl.program_id(0)
    H = heads * D
    scale = 1.0 / math.sqrt(D)

    def ln(x, g, b):
        x = x.astype(jnp.float32)
        mu = jnp.mean(x, axis=-1, keepdims=True)
        var = jnp.mean((x - mu) ** 2, axis=-1, keepdims=True)
        return (x - mu) * jax.lax.rsqrt(var + 1e-12) * g + b

    @pl.when(l == 0)
    def _():
        # embedding LayerNorm -> hidden_states[0]; classifier bias init.
        h_ref[...] = ln(emb_ref[...], embg_ref[...], embb_ref[...])
        logits_ref[...] = jnp.zeros_like(logits_ref) + clsb_ref[...]

    h = h_ref[...]                                            # (B*S, H)

    # ---- fused QKV projection: one MXU pass, lane-dense (H, 3H) weight ----
    qkv = jnp.dot(h, wqkv_ref[0], preferred_element_type=jnp.float32) + bqkv_ref[0]

    # ---- multi-head self-attention (all batches per head, no transposes) ----
    bias = bias_ref[...][:, None, :]                          # (B, 1, S) key-pad bias
    ctx_heads = []
    for hd in range(heads):                                   # static, unrolled
        qh = qkv[:, hd * D:(hd + 1) * D].reshape(B, S, D)
        kh = qkv[:, H + hd * D:H + (hd + 1) * D].reshape(B, S, D)
        vh = qkv[:, 2 * H + hd * D:2 * H + (hd + 1) * D].reshape(B, S, D)
        s = jnp.einsum('bqd,bkd->bqk', qh, kh,
                       preferred_element_type=jnp.float32) * scale + bias
        m = jnp.max(s, axis=-1, keepdims=True)
        e = jnp.exp(s - m)
        p = e * pl.reciprocal(jnp.sum(e, axis=-1, keepdims=True), approx=True)
        ctx_heads.append(
            jnp.einsum('bqk,bkd->bqd', p, vh,
                       preferred_element_type=jnp.float32).reshape(B * S, D))
    ctx = jnp.concatenate(ctx_heads, axis=-1)                 # (B*S, H)

    attn_out = jnp.dot(ctx, wo_ref[0], preferred_element_type=jnp.float32) + bo_ref[0]
    h1 = ln(h + attn_out, ln1g_ref[0], ln1b_ref[0])

    # ---- FFN ----
    inter = jnp.dot(h1, w1_ref[0], preferred_element_type=jnp.float32) + fb1_ref[0]
    # TODO(synk): HF BERT uses exact erf GELU; tanh approximation used here.
    inter = jax.nn.gelu(inter, approximate=True)
    ffn_out = jnp.dot(inter, w2_ref[0], preferred_element_type=jnp.float32) + fb2_ref[0]
    h2 = ln(h1 + ffn_out, ln2g_ref[0], ln2b_ref[0])
    h_ref[...] = h2                                           # carry to next layer

    # ---- last-4 CLS concat + linear head, folded in as a partial matmul:
    #      layer l's CLS rows multiply classifier slice slot (L-1-l). ----
    def cls_contrib():
        cls_rows = jnp.concatenate(
            [h2[b * S:b * S + 1, :] for b in range(B)], axis=0)   # (B, H)
        logits_ref[...] += jnp.dot(cls_rows, clsw_ref[0],
                                   preferred_element_type=jnp.float32)

    if num_layers > 4:
        pl.when(l >= num_layers - 4)(cls_contrib)
    else:
        cls_contrib()


# ------------------------ deterministic parameter init ---------------------

def init_params(key, *, vocab, hidden, heads, ffn, layers, max_pos):
    del heads
    ks = jax.random.split(key, 8)

    def nrm(k, shape, s=0.02):
        return s * jax.random.normal(k, shape, jnp.float32)

    return {
        "tok_emb": nrm(ks[0], (vocab, hidden)),
        "pos_emb": nrm(ks[1], (max_pos, hidden)),
        "emb_ln_g": jnp.ones((1, hidden), jnp.float32),
        "emb_ln_b": jnp.zeros((1, hidden), jnp.float32),
        # fused QKV weight: concat(wq | wk | wv) on the lane axis, stacked per layer
        "wqkv": nrm(ks[2], (layers, hidden, 3 * hidden)),
        "bqkv": jnp.zeros((layers, 1, 3 * hidden), jnp.float32),
        "wo": nrm(ks[3], (layers, hidden, hidden)),
        "bo": jnp.zeros((layers, 1, hidden), jnp.float32),
        "ln1_g": jnp.ones((layers, 1, hidden), jnp.float32),
        "ln1_b": jnp.zeros((layers, 1, hidden), jnp.float32),
        "w1": nrm(ks[4], (layers, hidden, ffn)),
        "b1": jnp.zeros((layers, 1, ffn), jnp.float32),
        "w2": nrm(ks[5], (layers, ffn, hidden)),
        "b2": jnp.zeros((layers, 1, hidden), jnp.float32),
        "ln2_g": jnp.ones((layers, 1, hidden), jnp.float32),
        "ln2_b": jnp.zeros((layers, 1, hidden), jnp.float32),
        "cls_w": nrm(ks[6], (4 * hidden, N_CLASSES)),
        "cls_b": jnp.zeros((N_CLASSES,), jnp.float32),
    }


# --------------------------------- forward ---------------------------------

def vdet_forward(params, ids, mask, *, heads):
    """Mirrors vdet_for_java.forward((ids, mask)) -> (B, 23) logits."""
    B, S = ids.shape
    hidden = params["tok_emb"].shape[1]
    L, _, ffn = params["w1"].shape
    D = hidden // heads

    # Token/position embedding gather stays in XLA (data-dependent gather);
    # the embedding LayerNorm runs inside the fused kernel at grid step 0.
    # TODO(synk): real JavaBERT also adds token_type embeddings (omitted in stand-in).
    emb = jnp.take(params["tok_emb"], ids, axis=0) + params["pos_emb"][None, :S, :]
    emb = emb.reshape(B * S, hidden).astype(jnp.float32)
    attn_bias = (1.0 - mask.astype(jnp.float32)) * -1e9          # (B, S) key bias

    # Classifier weight padded lane-dense to 128 and split into 4 CLS-concat slots:
    # slot s multiplies CLS(hidden_states[-(s+1)]) == CLS(layer L-1-s output).
    cw = jnp.zeros((4 * hidden, N_PAD), jnp.float32).at[:, :N_CLASSES].set(params["cls_w"])
    cw = cw.reshape(4, hidden, N_PAD)
    cb = jnp.zeros((1, N_PAD), jnp.float32).at[:, :N_CLASSES].set(params["cls_b"])

    per_layer = lambda l: (l, 0, 0)
    shared2 = lambda l: (0, 0)
    if L > 4:
        cls_map = lambda l: (jnp.maximum(L - 1 - l, 0), 0, 0)
    else:
        cls_map = lambda l: (L - 1 - l, 0, 0)

    kernel = functools.partial(_encoder_kernel, B=B, S=S, heads=heads, D=D,
                               num_layers=L)
    # nn.Dropout(0.1) -> identity in eval/inference (stochastic mode omitted).
    logits_pad = pl.pallas_call(
        kernel,
        out_shape=jax.ShapeDtypeStruct((B, N_PAD), jnp.float32),
        grid=(L,),
        in_specs=[
            pl.BlockSpec((B * S, hidden), shared2),          # embeddings
            pl.BlockSpec((B, S), shared2),                   # key-padding bias
            pl.BlockSpec((1, hidden), shared2),              # emb LN gamma
            pl.BlockSpec((1, hidden), shared2),              # emb LN beta
            pl.BlockSpec((1, hidden, 3 * hidden), per_layer),
            pl.BlockSpec((1, 1, 3 * hidden), per_layer),
            pl.BlockSpec((1, hidden, hidden), per_layer),
            pl.BlockSpec((1, 1, hidden), per_layer),
            pl.BlockSpec((1, 1, hidden), per_layer),
            pl.BlockSpec((1, 1, hidden), per_layer),
            pl.BlockSpec((1, hidden, ffn), per_layer),
            pl.BlockSpec((1, 1, ffn), per_layer),
            pl.BlockSpec((1, ffn, hidden), per_layer),
            pl.BlockSpec((1, 1, hidden), per_layer),
            pl.BlockSpec((1, 1, hidden), per_layer),
            pl.BlockSpec((1, 1, hidden), per_layer),
            pl.BlockSpec((1, hidden, N_PAD), cls_map),       # classifier slice
            pl.BlockSpec((1, N_PAD), shared2),               # classifier bias
        ],
        out_specs=pl.BlockSpec((B, N_PAD), shared2),         # logits accumulator
        scratch_shapes=[pltpu.VMEM((B * S, hidden), jnp.float32)],  # carried h
        compiler_params=pltpu.CompilerParams(
            dimension_semantics=("arbitrary",)),
    )(emb, attn_bias,
      params["emb_ln_g"], params["emb_ln_b"],
      params["wqkv"], params["bqkv"], params["wo"], params["bo"],
      params["ln1_g"], params["ln1_b"],
      params["w1"], params["b1"], params["w2"], params["b2"],
      params["ln2_g"], params["ln2_b"],
      cw, cb)
    return logits_pad[:, :N_CLASSES]


# ----------------------------------- main -----------------------------------

if __name__ == "__main__":
    key = jax.random.PRNGKey(0)
    B, S = 2, 8
    vocab, hidden, heads, ffn, layers, max_pos = 64, 32, 2, 64, 4, 16

    pkey, ikey = jax.random.split(key)
    params = init_params(pkey, vocab=vocab, hidden=hidden, heads=heads,
                         ffn=ffn, layers=layers, max_pos=max_pos)

    ids = jax.random.randint(ikey, (B, S), 0, vocab, dtype=jnp.int32)
    mask = jnp.ones((B, S), jnp.int32).at[1, 6:].set(0)  # pad last 2 tokens of item 1

    fwd = jax.jit(functools.partial(vdet_forward, heads=heads))
    out = fwd(params, ids, mask)
    jax.block_until_ready(out)
    assert out.shape == (B, N_CLASSES) and out.dtype == jnp.float32
    print("KERNEL_OK")
</pallas_src>

<mosaic_0001>
module attributes {stable_mosaic.version = 11 : i64} {
  func.func @_encoder_kernel(%arg0: i32, %arg1: memref<16x32xf32, #tpu.memory_space<vmem>>, %arg2: memref<2x8xf32, #tpu.memory_space<vmem>>, %arg3: memref<1x32xf32, #tpu.memory_space<vmem>>, %arg4: memref<1x32xf32, #tpu.memory_space<vmem>>, %arg5: memref<1x32x96xf32, #tpu.memory_space<vmem>>, %arg6: memref<1x1x96xf32, #tpu.memory_space<vmem>>, %arg7: memref<1x32x32xf32, #tpu.memory_space<vmem>>, %arg8: memref<1x1x32xf32, #tpu.memory_space<vmem>>, %arg9: memref<1x1x32xf32, #tpu.memory_space<vmem>>, %arg10: memref<1x1x32xf32, #tpu.memory_space<vmem>>, %arg11: memref<1x32x64xf32, #tpu.memory_space<vmem>>, %arg12: memref<1x1x64xf32, #tpu.memory_space<vmem>>, %arg13: memref<1x64x32xf32, #tpu.memory_space<vmem>>, %arg14: memref<1x1x32xf32, #tpu.memory_space<vmem>>, %arg15: memref<1x1x32xf32, #tpu.memory_space<vmem>>, %arg16: memref<1x1x32xf32, #tpu.memory_space<vmem>>, %arg17: memref<1x32x128xf32, #tpu.memory_space<vmem>>, %arg18: memref<1x128xf32, #tpu.memory_space<vmem>>, %arg19: memref<2x128xf32, #tpu.memory_space<vmem>>, %arg20: memref<16x32xf32, #tpu.memory_space<vmem>>) attributes {dimension_semantics = [#tpu.dimension_semantics<arbitrary>], iteration_bounds = array<i64: 4>, scalar_prefetch = 0 : i64, scratch_operands = 1 : i64, tpu.core_type = #tpu.core_type<tc>, window_params = [{pipeline_mode = #tpu.pipeline_mode<synchronous>, transform_indices = @transform_0, window_bounds = array<i64: 16, 32>}, {pipeline_mode = #tpu.pipeline_mode<synchronous>, transform_indices = @transform_1, window_bounds = array<i64: 2, 8>}, {pipeline_mode = #tpu.pipeline_mode<synchronous>, transform_indices = @transform_2, window_bounds = array<i64: 1, 32>}, {pipeline_mode = #tpu.pipeline_mode<synchronous>, transform_indices = @transform_3, window_bounds = array<i64: 1, 32>}, {transform_indices = @transform_4, window_bounds = array<i64: 1, 32, 96>}, {transform_indices = @transform_5, window_bounds = array<i64: 1, 1, 96>}, {transform_indices = @transform_6, window_bounds = array<i64: 1, 32, 32>}, {transform_indices = @transform_7, window_bounds = array<i64: 1, 1, 32>}, {transform_indices = @transform_8, window_bounds = array<i64: 1, 1, 32>}, {transform_indices = @transform_9, window_bounds = array<i64: 1, 1, 32>}, {transform_indices = @transform_10, window_bounds = array<i64: 1, 32, 64>}, {transform_indices = @transform_11, window_bounds = array<i64: 1, 1, 64>}, {transform_indices = @transform_12, window_bounds = array<i64: 1, 64, 32>}, {transform_indices = @transform_13, window_bounds = array<i64: 1, 1, 32>}, {transform_indices = @transform_14, window_bounds = array<i64: 1, 1, 32>}, {transform_indices = @transform_15, window_bounds = array<i64: 1, 1, 32>}, {transform_indices = @transform_16, window_bounds = array<i64: 1, 32, 128>}, {pipeline_mode = #tpu.pipeline_mode<synchronous>, transform_indices = @transform_17, window_bounds = array<i64: 1, 128>}, {pipeline_mode = #tpu.pipeline_mode<synchronous>, transform_indices = @transform_18, window_bounds = array<i64: 2, 128>}]} {
    %c0_i32 = arith.constant 0 : i32
    %0 = arith.cmpi eq, %arg0, %c0_i32 : i32
    %1 = arith.extui %0 : i1 to i32
    %c0_i32_0 = arith.constant 0 : i32
    %2 = arith.cmpi ne, %1, %c0_i32_0 : i32
    scf.if %2 {
      %c0_77 = arith.constant 0 : index
      %c0_78 = arith.constant 0 : index
      %158 = vector.load %arg1[%c0_77, %c0_78] : memref<16x32xf32, #tpu.memory_space<vmem>>, vector<16x32xf32>
      %c0_79 = arith.constant 0 : index
      %c0_80 = arith.constant 0 : index
      %159 = vector.load %arg3[%c0_79, %c0_80] : memref<1x32xf32, #tpu.memory_space<vmem>>, vector<1x32xf32>
      %c0_81 = arith.constant 0 : index
      %c0_82 = arith.constant 0 : index
      %160 = vector.load %arg4[%c0_81, %c0_82] : memref<1x32xf32, #tpu.memory_space<vmem>>, vector<1x32xf32>
      %cst_83 = arith.constant dense<0.000000e+00> : vector<16xf32>
      %161 = vector.multi_reduction <add>, %158, %cst_83 [1] : vector<16x32xf32> to vector<16xf32>
      %162 = vector.shape_cast %161 : vector<16xf32> to vector<16x1xf32>
      %cst_84 = arith.constant 3.200000e+01 : f32
      %163 = vector.broadcast %cst_84 : f32 to vector<16x1xf32>
      %164 = arith.divf %162, %163 : vector<16x1xf32>
      %165 = vector.broadcast %164 : vector<16x1xf32> to vector<16x32xf32>
      %166 = arith.subf %158, %165 : vector<16x32xf32>
      %167 = arith.mulf %166, %166 : vector<16x32xf32>
      %cst_85 = arith.constant dense<0.000000e+00> : vector<16xf32>
      %168 = vector.multi_reduction <add>, %167, %cst_85 [1] : vector<16x32xf32> to vector<16xf32>
      %169 = vector.shape_cast %168 : vector<16xf32> to vector<16x1xf32>
      %cst_86 = arith.constant 3.200000e+01 : f32
      %170 = vector.broadcast %cst_86 : f32 to vector<16x1xf32>
      %171 = arith.divf %169, %170 : vector<16x1xf32>
      %172 = vector.broadcast %164 : vector<16x1xf32> to vector<16x32xf32>
      %173 = arith.subf %158, %172 : vector<16x32xf32>
      %cst_87 = arith.constant 9.99999996E-13 : f32
      %174 = vector.broadcast %cst_87 : f32 to vector<16x1xf32>
      %175 = arith.addf %171, %174 : vector<16x1xf32>
      %176 = math.rsqrt %175 : vector<16x1xf32>
      %177 = vector.broadcast %176 : vector<16x1xf32> to vector<16x32xf32>
      %178 = arith.mulf %173, %177 : vector<16x32xf32>
      %179 = vector.broadcast %159 : vector<1x32xf32> to vector<16x32xf32>
      %180 = arith.mulf %178, %179 : vector<16x32xf32>
      %181 = vector.broadcast %160 : vector<1x32xf32> to vector<16x32xf32>
      %182 = arith.addf %180, %181 : vector<16x32xf32>
      %c0_88 = arith.constant 0 : index
      %c0_89 = arith.constant 0 : index
      %183 = vector.load %arg20[%c0_88, %c0_89] : memref<16x32xf32, #tpu.memory_space<vmem>>, vector<16x32xf32>
      tpu.vector_store %arg20[%c0_88, %c0_89], %182 {strides = array<i32>} : memref<16x32xf32, #tpu.memory_space<vmem>>, vector<16x32xf32>,
      %cst_90 = arith.constant 0.000000e+00 : f32
      %184 = vector.broadcast %cst_90 : f32 to vector<2x128xf32>
      %c0_91 = arith.constant 0 : index
      %c0_92 = arith.constant 0 : index
      %185 = vector.load %arg18[%c0_91, %c0_92] : memref<1x128xf32, #tpu.memory_space<vmem>>, vector<1x128xf32>
      %186 = vector.broadcast %185 : vector<1x128xf32> to vector<2x128xf32>
      %187 = arith.addf %184, %186 : vector<2x128xf32>
      %c0_93 = arith.constant 0 : index
      %c0_94 = arith.constant 0 : index
      %188 = vector.load %arg19[%c0_93, %c0_94] : memref<2x128xf32, #tpu.memory_space<vmem>>, vector<2x128xf32>
      tpu.vector_store %arg19[%c0_93, %c0_94], %187 {strides = array<i32>} : memref<2x128xf32, #tpu.memory_space<vmem>>, vector<2x128xf32>,
    } else {
    }
    %c0 = arith.constant 0 : index
    %c0_1 = arith.constant 0 : index
    %3 = vector.load %arg20[%c0, %c0_1] : memref<16x32xf32, #tpu.memory_space<vmem>>, vector<16x32xf32>
    %c0_2 = arith.constant 0 : index
    %c0_3 = arith.constant 0 : index
    %c0_4 = arith.constant 0 : index
    %4 = vector.load %arg5[%c0_2, %c0_3, %c0_4] : memref<1x32x96xf32, #tpu.memory_space<vmem>>, vector<1x32x96xf32>
    %5 = vector.shape_cast %4 : vector<1x32x96xf32> to vector<32x96xf32>
    %cst = arith.constant dense<0.000000e+00> : vector<16x96xf32>
    %6 = tpu.matmul %3, %5, %cst {dimension_numbers = #tpu.dot_dimension_numbers<[1], [0], [0], [1], [0, 0, 1, 1], [], []>} : vector<16x32xf32>, vector<32x96xf32>, vector<16x96xf32> -> vector<16x96xf32>
    %c0_5 = arith.constant 0 : index
    %c0_6 = arith.constant 0 : index
    %c0_7 = arith.constant 0 : index
    %7 = vector.load %arg6[%c0_5, %c0_6, %c0_7] : memref<1x1x96xf32, #tpu.memory_space<vmem>>, vector<1x1x96xf32>
    %8 = vector.shape_cast %7 : vector<1x1x96xf32> to vector<1x96xf32>
    %9 = vector.broadcast %8 : vector<1x96xf32> to vector<16x96xf32>
    %10 = arith.addf %6, %9 : vector<16x96xf32>
    %c0_8 = arith.constant 0 : index
    %c0_9 = arith.constant 0 : index
    %11 = vector.load %arg2[%c0_8, %c0_9] : memref<2x8xf32, #tpu.memory_space<vmem>>, vector<2x8xf32>
    %12 = vector.shape_cast %11 : vector<2x8xf32> to vector<2x1x8xf32>
    %13 = vector.extract_strided_slice %10 {offsets = [0, 0], sizes = [16, 16], strides = [1, 1]} : vector<16x96xf32> to vector<16x16xf32>
    %14 = vector.shape_cast %13 : vector<16x16xf32> to vector<2x8x16xf32>
    %15 = vector.extract_strided_slice %10 {offsets = [0, 32], sizes = [16, 16], strides = [1, 1]} : vector<16x96xf32> to vector<16x16xf32>
    %16 = vector.shape_cast %15 : vector<16x16xf32> to vector<2x8x16xf32>
    %17 = vector.extract_strided_slice %10 {offsets = [0, 64], sizes = [16, 16], strides = [1, 1]} : vector<16x96xf32> to vector<16x16xf32>
    %18 = vector.shape_cast %17 : vector<16x16xf32> to vector<2x8x16xf32>
    "tpu.trace_start"() <{level = 10 : i32, message = "bqd,bkd->bqk"}> : () -> ()
    %cst_10 = arith.constant dense<0.000000e+00> : vector<2x8x8xf32>
    %19 = tpu.matmul %14, %16, %cst_10 {dimension_numbers = #tpu.dot_dimension_numbers<[2], [2], [1], [1], [0, 0, 0, 1, 1, 1], [0], [0]>} : vector<2x8x16xf32>, vector<2x8x16xf32>, vector<2x8x8xf32> -> vector<2x8x8xf32>
    "tpu.trace_stop"() : () -> ()
    %cst_11 = arith.constant 2.500000e-01 : f32
    %20 = vector.broadcast %cst_11 : f32 to vector<2x8x8xf32>
    %21 = arith.mulf %19, %20 : vector<2x8x8xf32>
    %22 = vector.broadcast %12 : vector<2x1x8xf32> to vector<2x8x8xf32>
    %23 = arith.addf %21, %22 : vector<2x8x8xf32>
    %cst_12 = arith.constant dense<0xFF800000> : vector<2x8xf32>
    %24 = vector.multi_reduction <maximumf>, %23, %cst_12 [2] : vector<2x8x8xf32> to vector<2x8xf32>
    %25 = vector.shape_cast %24 : vector<2x8xf32> to vector<2x8x1xf32>
    %26 = vector.broadcast %25 : vector<2x8x1xf32> to vector<2x8x8xf32>
    %27 = arith.subf %23, %26 : vector<2x8x8xf32>
    %28 = math.exp %27 : vector<2x8x8xf32>
    %cst_13 = arith.constant dense<0.000000e+00> : vector<2x8xf32>
    %29 = vector.multi_reduction <add>, %28, %cst_13 [2] : vector<2x8x8xf32> to vector<2x8xf32>
    %30 = vector.shape_cast %29 : vector<2x8xf32> to vector<2x8x1xf32>
    %31 = tpu.reciprocal %30 {approx = true} : vector<2x8x1xf32> -> vector<2x8x1xf32>
    %32 = vector.broadcast %31 : vector<2x8x1xf32> to vector<2x8x8xf32>
    %33 = arith.mulf %28, %32 : vector<2x8x8xf32>
    "tpu.trace_start"() <{level = 10 : i32, message = "bqk,bkd->bqd"}> : () -> ()
    %cst_14 = arith.constant dense<0.000000e+00> : vector<2x8x16xf32>
    %34 = tpu.matmul %33, %18, %cst_14 {dimension_numbers = #tpu.dot_dimension_numbers<[2], [1], [1], [2], [0, 0, 0, 1, 1, 2], [0], [0]>} : vector<2x8x8xf32>, vector<2x8x16xf32>, vector<2x8x16xf32> -> vector<2x8x16xf32>
    "tpu.trace_stop"() : () -> ()
    %35 = vector.shape_cast %34 : vector<2x8x16xf32> to vector<16x16xf32>
    %36 = vector.extract_strided_slice %10 {offsets = [0, 16], sizes = [16, 16], strides = [1, 1]} : vector<16x96xf32> to vector<16x16xf32>
    %37 = vector.shape_cast %36 : vector<16x16xf32> to vector<2x8x16xf32>
    %38 = vector.extract_strided_slice %10 {offsets = [0, 48], sizes = [16, 16], strides = [1, 1]} : vector<16x96xf32> to vector<16x16xf32>
    %39 = vector.shape_cast %38 : vector<16x16xf32> to vector<2x8x16xf32>
    %40 = vector.extract_strided_slice %10 {offsets = [0, 80], sizes = [16, 16], strides = [1, 1]} : vector<16x96xf32> to vector<16x16xf32>
    %41 = vector.shape_cast %40 : vector<16x16xf32> to vector<2x8x16xf32>
    "tpu.trace_start"() <{level = 10 : i32, message = "bqd,bkd->bqk"}> : () -> ()
    %cst_15 = arith.constant dense<0.000000e+00> : vector<2x8x8xf32>
    %42 = tpu.matmul %37, %39, %cst_15 {dimension_numbers = #tpu.dot_dimension_numbers<[2], [2], [1], [1], [0, 0, 0, 1, 1, 1], [0], [0]>} : vector<2x8x16xf32>, vector<2x8x16xf32>, vector<2x8x8xf32> -> vector<2x8x8xf32>
    "tpu.trace_stop"() : () -> ()
    %cst_16 = arith.constant 2.500000e-01 : f32
    %43 = vector.broadcast %cst_16 : f32 to vector<2x8x8xf32>
    %44 = arith.mulf %42, %43 : vector<2x8x8xf32>
    %45 = vector.broadcast %12 : vector<2x1x8xf32> to vector<2x8x8xf32>
    %46 = arith.addf %44, %45 : vector<2x8x8xf32>
    %cst_17 = arith.constant dense<0xFF800000> : vector<2x8xf32>
    %47 = vector.multi_reduction <maximumf>, %46, %cst_17 [2] : vector<2x8x8xf32> to vector<2x8xf32>
    %48 = vector.shape_cast %47 : vector<2x8xf32> to vector<2x8x1xf32>
    %49 = vector.broadcast %48 : vector<2x8x1xf32> to vector<2x8x8xf32>
    %50 = arith.subf %46, %49 : vector<2x8x8xf32>
    %51 = math.exp %50 : vector<2x8x8xf32>
    %cst_18 = arith.constant dense<0.000000e+00> : vector<2x8xf32>
    %52 = vector.multi_reduction <add>, %51, %cst_18 [2] : vector<2x8x8xf32> to vector<2x8xf32>
    %53 = vector.shape_cast %52 : vector<2x8xf32> to vector<2x8x1xf32>
    %54 = tpu.reciprocal %53 {approx = true} : vector<2x8x1xf32> -> vector<2x8x1xf32>
    %55 = vector.broadcast %54 : vector<2x8x1xf32> to vector<2x8x8xf32>
    %56 = arith.mulf %51, %55 : vector<2x8x8xf32>
    "tpu.trace_start"() <{level = 10 : i32, message = "bqk,bkd->bqd"}> : () -> ()
    %cst_19 = arith.constant dense<0.000000e+00> : vector<2x8x16xf32>
    %57 = tpu.matmul %56, %41, %cst_19 {dimension_numbers = #tpu.dot_dimension_numbers<[2], [1], [1], [2], [0, 0, 0, 1, 1, 2], [0], [0]>} : vector<2x8x8xf32>, vector<2x8x16xf32>, vector<2x8x16xf32> -> vector<2x8x16xf32>
    "tpu.trace_stop"() : () -> ()
    %58 = vector.shape_cast %57 : vector<2x8x16xf32> to vector<16x16xf32>
    %59 = tpu.concatenate %35, %58 in 1 : vector<16x16xf32>, vector<16x16xf32> -> vector<16x32xf32>
    %c0_20 = arith.constant 0 : index
    %c0_21 = arith.constant 0 : index
    %c0_22 = arith.constant 0 : index
    %60 = vector.load %arg7[%c0_20, %c0_21, %c0_22] : memref<1x32x32xf32, #tpu.memory_space<vmem>>, vector<1x32x32xf32>
    %61 = vector.shape_cast %60 : vector<1x32x32xf32> to vector<32x32xf32>
    %cst_23 = arith.constant dense<0.000000e+00> : vector<16x32xf32>
    %62 = tpu.matmul %59, %61, %cst_23 {dimension_numbers = #tpu.dot_dimension_numbers<[1], [0], [0], [1], [0, 0, 1, 1], [], []>} : vector<16x32xf32>, vector<32x32xf32>, vector<16x32xf32> -> vector<16x32xf32>
    %c0_24 = arith.constant 0 : index
    %c0_25 = arith.constant 0 : index
    %c0_26 = arith.constant 0 : index
    %63 = vector.load %arg8[%c0_24, %c0_25, %c0_26] : memref<1x1x32xf32, #tpu.memory_space<vmem>>, vector<1x1x32xf32>
    %64 = vector.shape_cast %63 : vector<1x1x32xf32> to vector<1x32xf32>
    %65 = vector.broadcast %64 : vector<1x32xf32> to vector<16x32xf32>
    %66 = arith.addf %62, %65 : vector<16x32xf32>
    %67 = arith.addf %3, %66 : vector<16x32xf32>
    %c0_27 = arith.constant 0 : index
    %c0_28 = arith.constant 0 : index
    %c0_29 = arith.constant 0 : index
    %68 = vector.load %arg9[%c0_27, %c0_28, %c0_29] : memref<1x1x32xf32, #tpu.memory_space<vmem>>, vector<1x1x32xf32>
    %69 = vector.shape_cast %68 : vector<1x1x32xf32> to vector<1x32xf32>
    %c0_30 = arith.constant 0 : index
    %c0_31 = arith.constant 0 : index
    %c0_32 = arith.constant 0 : index
    %70 = vector.load %arg10[%c0_30, %c0_31, %c0_32] : memref<1x1x32xf32, #tpu.memory_space<vmem>>, vector<1x1x32xf32>
    %71 = vector.shape_cast %70 : vector<1x1x32xf32> to vector<1x32xf32>
    %cst_33 = arith.constant dense<0.000000e+00> : vector<16xf32>
    %72 = vector.multi_reduction <add>, %67, %cst_33 [1] : vector<16x32xf32> to vector<16xf32>
    %73 = vector.shape_cast %72 : vector<16xf32> to vector<16x1xf32>
    %cst_34 = arith.constant 3.200000e+01 : f32
    %74 = vector.broadcast %cst_34 : f32 to vector<16x1xf32>
    %75 = arith.divf %73, %74 : vector<16x1xf32>
    %76 = vector.broadcast %75 : vector<16x1xf32> to vector<16x32xf32>
    %77 = arith.subf %67, %76 : vector<16x32xf32>
    %78 = arith.mulf %77, %77 : vector<16x32xf32>
    %cst_35 = arith.constant dense<0.000000e+00> : vector<16xf32>
    %79 = vector.multi_reduction <add>, %78, %cst_35 [1] : vector<16x32xf32> to vector<16xf32>
    %80 = vector.shape_cast %79 : vector<16xf32> to vector<16x1xf32>
    %cst_36 = arith.constant 3.200000e+01 : f32
    %81 = vector.broadcast %cst_36 : f32 to vector<16x1xf32>
    %82 = arith.divf %80, %81 : vector<16x1xf32>
    %83 = vector.broadcast %75 : vector<16x1xf32> to vector<16x32xf32>
    %84 = arith.subf %67, %83 : vector<16x32xf32>
    %cst_37 = arith.constant 9.99999996E-13 : f32
    %85 = vector.broadcast %cst_37 : f32 to vector<16x1xf32>
    %86 = arith.addf %82, %85 : vector<16x1xf32>
    %87 = math.rsqrt %86 : vector<16x1xf32>
    %88 = vector.broadcast %87 : vector<16x1xf32> to vector<16x32xf32>
    %89 = arith.mulf %84, %88 : vector<16x32xf32>
    %90 = vector.broadcast %69 : vector<1x32xf32> to vector<16x32xf32>
    %91 = arith.mulf %89, %90 : vector<16x32xf32>
    %92 = vector.broadcast %71 : vector<1x32xf32> to vector<16x32xf32>
    %93 = arith.addf %91, %92 : vector<16x32xf32>
    %c0_38 = arith.constant 0 : index
    %c0_39 = arith.constant 0 : index
    %c0_40 = arith.constant 0 : index
    %94 = vector.load %arg11[%c0_38, %c0_39, %c0_40] : memref<1x32x64xf32, #tpu.memory_space<vmem>>, vector<1x32x64xf32>
    %95 = vector.shape_cast %94 : vector<1x32x64xf32> to vector<32x64xf32>
    %cst_41 = arith.constant dense<0.000000e+00> : vector<16x64xf32>
    %96 = tpu.matmul %93, %95, %cst_41 {dimension_numbers = #tpu.dot_dimension_numbers<[1], [0], [0], [1], [0, 0, 1, 1], [], []>} : vector<16x32xf32>, vector<32x64xf32>, vector<16x64xf32> -> vector<16x64xf32>
    %c0_42 = arith.constant 0 : index
    %c0_43 = arith.constant 0 : index
    %c0_44 = arith.constant 0 : index
    %97 = vector.load %arg12[%c0_42, %c0_43, %c0_44] : memref<1x1x64xf32, #tpu.memory_space<vmem>>, vector<1x1x64xf32>
    %98 = vector.shape_cast %97 : vector<1x1x64xf32> to vector<1x64xf32>
    %99 = vector.broadcast %98 : vector<1x64xf32> to vector<16x64xf32>
    %100 = arith.addf %96, %99 : vector<16x64xf32>
    %101 = arith.mulf %100, %100 : vector<16x64xf32>
    %102 = arith.mulf %100, %101 : vector<16x64xf32>
    %cst_45 = arith.constant 4.471500e-02 : f32
    %103 = vector.broadcast %cst_45 : f32 to vector<16x64xf32>
    %104 = arith.mulf %103, %102 : vector<16x64xf32>
    %105 = arith.addf %100, %104 : vector<16x64xf32>
    %cst_46 = arith.constant 0.797884583 : f32
    %106 = vector.broadcast %cst_46 : f32 to vector<16x64xf32>
    %107 = arith.mulf %106, %105 : vector<16x64xf32>
    %108 = math.tanh %107 : vector<16x64xf32>
    %cst_47 = arith.constant 1.000000e+00 : f32
    %109 = vector.broadcast %cst_47 : f32 to vector<16x64xf32>
    %110 = arith.addf %109, %108 : vector<16x64xf32>
    %cst_48 = arith.constant 5.000000e-01 : f32
    %111 = vector.broadcast %cst_48 : f32 to vector<16x64xf32>
    %112 = arith.mulf %111, %110 : vector<16x64xf32>
    %113 = arith.mulf %100, %112 : vector<16x64xf32>
    %c0_49 = arith.constant 0 : index
    %c0_50 = arith.constant 0 : index
    %c0_51 = arith.constant 0 : index
    %114 = vector.load %arg13[%c0_49, %c0_50, %c0_51] : memref<1x64x32xf32, #tpu.memory_space<vmem>>, vector<1x64x32xf32>
    %115 = vector.shape_cast %114 : vector<1x64x32xf32> to vector<64x32xf32>
    %cst_52 = arith.constant dense<0.000000e+00> : vector<16x32xf32>
    %116 = tpu.matmul %113, %115, %cst_52 {dimension_numbers = #tpu.dot_dimension_numbers<[1], [0], [0], [1], [0, 0, 1, 1], [], []>} : vector<16x64xf32>, vector<64x32xf32>, vector<16x32xf32> -> vector<16x32xf32>
    %c0_53 = arith.constant 0 : index
    %c0_54 = arith.constant 0 : index
    %c0_55 = arith.constant 0 : index
    %117 = vector.load %arg14[%c0_53, %c0_54, %c0_55] : memref<1x1x32xf32, #tpu.memory_space<vmem>>, vector<1x1x32xf32>
    %118 = vector.shape_cast %117 : vector<1x1x32xf32> to vector<1x32xf32>
    %119 = vector.broadcast %118 : vector<1x32xf32> to vector<16x32xf32>
    %120 = arith.addf %116, %119 : vector<16x32xf32>
    %121 = arith.addf %93, %120 : vector<16x32xf32>
    %c0_56 = arith.constant 0 : index
    %c0_57 = arith.constant 0 : index
    %c0_58 = arith.constant 0 : index
    %122 = vector.load %arg15[%c0_56, %c0_57, %c0_58] : memref<1x1x32xf32, #tpu.memory_space<vmem>>, vector<1x1x32xf32>
    %123 = vector.shape_cast %122 : vector<1x1x32xf32> to vector<1x32xf32>
    %c0_59 = arith.constant 0 : index
    %c0_60 = arith.constant 0 : index
    %c0_61 = arith.constant 0 : index
    %124 = vector.load %arg16[%c0_59, %c0_60, %c0_61] : memref<1x1x32xf32, #tpu.memory_space<vmem>>, vector<1x1x32xf32>
    %125 = vector.shape_cast %124 : vector<1x1x32xf32> to vector<1x32xf32>
    %cst_62 = arith.constant dense<0.000000e+00> : vector<16xf32>
    %126 = vector.multi_reduction <add>, %121, %cst_62 [1] : vector<16x32xf32> to vector<16xf32>
    %127 = vector.shape_cast %126 : vector<16xf32> to vector<16x1xf32>
    %cst_63 = arith.constant 3.200000e+01 : f32
    %128 = vector.broadcast %cst_63 : f32 to vector<16x1xf32>
    %129 = arith.divf %127, %128 : vector<16x1xf32>
    %130 = vector.broadcast %129 : vector<16x1xf32> to vector<16x32xf32>
    %131 = arith.subf %121, %130 : vector<16x32xf32>
    %132 = arith.mulf %131, %131 : vector<16x32xf32>
    %cst_64 = arith.constant dense<0.000000e+00> : vector<16xf32>
    %133 = vector.multi_reduction <add>, %132, %cst_64 [1] : vector<16x32xf32> to vector<16xf32>
    %134 = vector.shape_cast %133 : vector<16xf32> to vector<16x1xf32>
    %cst_65 = arith.constant 3.200000e+01 : f32
    %135 = vector.broadcast %cst_65 : f32 to vector<16x1xf32>
    %136 = arith.divf %134, %135 : vector<16x1xf32>
    %137 = vector.broadcast %129 : vector<16x1xf32> to vector<16x32xf32>
    %138 = arith.subf %121, %137 : vector<16x32xf32>
    %cst_66 = arith.constant 9.99999996E-13 : f32
    %139 = vector.broadcast %cst_66 : f32 to vector<16x1xf32>
    %140 = arith.addf %136, %139 : vector<16x1xf32>
    %141 = math.rsqrt %140 : vector<16x1xf32>
    %142 = vector.broadcast %141 : vector<16x1xf32> to vector<16x32xf32>
    %143 = arith.mulf %138, %142 : vector<16x32xf32>
    %144 = vector.broadcast %123 : vector<1x32xf32> to vector<16x32xf32>
    %145 = arith.mulf %143, %144 : vector<16x32xf32>
    %146 = vector.broadcast %125 : vector<1x32xf32> to vector<16x32xf32>
    %147 = arith.addf %145, %146 : vector<16x32xf32>
    %c0_67 = arith.constant 0 : index
    %c0_68 = arith.constant 0 : index
    %148 = vector.load %arg20[%c0_67, %c0_68] : memref<16x32xf32, #tpu.memory_space<vmem>>, vector<16x32xf32>
    tpu.vector_store %arg20[%c0_67, %c0_68], %147 {strides = array<i32>} : memref<16x32xf32, #tpu.memory_space<vmem>>, vector<16x32xf32>,
    %149 = vector.extract_strided_slice %147 {offsets = [0, 0], sizes = [1, 32], strides = [1, 1]} : vector<16x32xf32> to vector<1x32xf32>
    %150 = vector.extract_strided_slice %147 {offsets = [8, 0], sizes = [1, 32], strides = [1, 1]} : vector<16x32xf32> to vector<1x32xf32>
    %151 = tpu.concatenate %149, %150 in 0 : vector<1x32xf32>, vector<1x32xf32> -> vector<2x32xf32>
    %c0_69 = arith.constant 0 : index
    %c0_70 = arith.constant 0 : index
    %152 = vector.load %arg19[%c0_69, %c0_70] : memref<2x128xf32, #tpu.memory_space<vmem>>, vector<2x128xf32>
    %c0_71 = arith.constant 0 : index
    %c0_72 = arith.constant 0 : index
    %c0_73 = arith.constant 0 : index
    %153 = vector.load %arg17[%c0_71, %c0_72, %c0_73] : memref<1x32x128xf32, #tpu.memory_space<vmem>>, vector<1x32x128xf32>
    %154 = vector.shape_cast %153 : vector<1x32x128xf32> to vector<32x128xf32>
    %cst_74 = arith.constant dense<0.000000e+00> : vector<2x128xf32>
    %155 = tpu.matmul %151, %154, %cst_74 {dimension_numbers = #tpu.dot_dimension_numbers<[1], [0], [0], [1], [0, 0, 1, 1], [], []>} : vector<2x32xf32>, vector<32x128xf32>, vector<2x128xf32> -> vector<2x128xf32>
    %156 = arith.addf %152, %155 : vector<2x128xf32>
    %c0_75 = arith.constant 0 : index
    %c0_76 = arith.constant 0 : index
    %157 = vector.load %arg19[%c0_75, %c0_76] : memref<2x128xf32, #tpu.memory_space<vmem>>, vector<2x128xf32>
    tpu.vector_store %arg19[%c0_75, %c0_76], %156 {strides = array<i32>} : memref<2x128xf32, #tpu.memory_space<vmem>>, vector<2x128xf32>,
    return
  }
  func.func @transform_0(%arg0: i32) -> (i32, i32) {
    %c0_i32 = arith.constant 0 : i32
    %c0_i32_0 = arith.constant 0 : i32
    %c0_i32_1 = arith.constant 0 : i32
    return %c0_i32, %c0_i32_0 : i32, i32
  }
  func.func @transform_1(%arg0: i32) -> (i32, i32) {
    %c0_i32 = arith.constant 0 : i32
    %c0_i32_0 = arith.constant 0 : i32
    %c0_i32_1 = arith.constant 0 : i32
    return %c0_i32, %c0_i32_0 : i32, i32
  }
  func.func @transform_2(%arg0: i32) -> (i32, i32) {
    %c0_i32 = arith.constant 0 : i32
    %c0_i32_0 = arith.constant 0 : i32
    %c0_i32_1 = arith.constant 0 : i32
    return %c0_i32, %c0_i32_0 : i32, i32
  }
  func.func @transform_3(%arg0: i32) -> (i32, i32) {
    %c0_i32 = arith.constant 0 : i32
    %c0_i32_0 = arith.constant 0 : i32
    %c0_i32_1 = arith.constant 0 : i32
    return %c0_i32, %c0_i32_0 : i32, i32
  }
  func.func @transform_4(%arg0: i32) -> (i32, i32, i32) {
    %c0_i32 = arith.constant 0 : i32
    %c0_i32_0 = arith.constant 0 : i32
    %c0_i32_1 = arith.constant 0 : i32
    return %arg0, %c0_i32, %c0_i32_0 : i32, i32, i32
  }
  func.func @transform_5(%arg0: i32) -> (i32, i32, i32) {
    %c0_i32 = arith.constant 0 : i32
    %c0_i32_0 = arith.constant 0 : i32
    %c0_i32_1 = arith.constant 0 : i32
    return %arg0, %c0_i32, %c0_i32_0 : i32, i32, i32
  }
  func.func @transform_6(%arg0: i32) -> (i32, i32, i32) {
    %c0_i32 = arith.constant 0 : i32
    %c0_i32_0 = arith.constant 0 : i32
    %c0_i32_1 = arith.constant 0 : i32
    return %arg0, %c0_i32, %c0_i32_0 : i32, i32, i32
  }
  func.func @transform_7(%arg0: i32) -> (i32, i32, i32) {
    %c0_i32 = arith.constant 0 : i32
    %c0_i32_0 = arith.constant 0 : i32
    %c0_i32_1 = arith.constant 0 : i32
    return %arg0, %c0_i32, %c0_i32_0 : i32, i32, i32
  }
  func.func @transform_8(%arg0: i32) -> (i32, i32, i32) {
    %c0_i32 = arith.constant 0 : i32
    %c0_i32_0 = arith.constant 0 : i32
    %c0_i32_1 = arith.constant 0 : i32
    return %arg0, %c0_i32, %c0_i32_0 : i32, i32, i32
  }
  func.func @transform_9(%arg0: i32) -> (i32, i32, i32) {
    %c0_i32 = arith.constant 0 : i32
    %c0_i32_0 = arith.constant 0 : i32
    %c0_i32_1 = arith.constant 0 : i32
    return %arg0, %c0_i32, %c0_i32_0 : i32, i32, i32
  }
  func.func @transform_10(%arg0: i32) -> (i32, i32, i32) {
    %c0_i32 = arith.constant 0 : i32
    %c0_i32_0 = arith.constant 0 : i32
    %c0_i32_1 = arith.constant 0 : i32
    return %arg0, %c0_i32, %c0_i32_0 : i32, i32, i32
  }
  func.func @transform_11(%arg0: i32) -> (i32, i32, i32) {
    %c0_i32 = arith.constant 0 : i32
    %c0_i32_0 = arith.constant 0 : i32
    %c0_i32_1 = arith.constant 0 : i32
    return %arg0, %c0_i32, %c0_i32_0 : i32, i32, i32
  }
  func.func @transform_12(%arg0: i32) -> (i32, i32, i32) {
    %c0_i32 = arith.constant 0 : i32
    %c0_i32_0 = arith.constant 0 : i32
    %c0_i32_1 = arith.constant 0 : i32
    return %arg0, %c0_i32, %c0_i32_0 : i32, i32, i32
  }
  func.func @transform_13(%arg0: i32) -> (i32, i32, i32) {
    %c0_i32 = arith.constant 0 : i32
    %c0_i32_0 = arith.constant 0 : i32
    %c0_i32_1 = arith.constant 0 : i32
    return %arg0, %c0_i32, %c0_i32_0 : i32, i32, i32
  }
  func.func @transform_14(%arg0: i32) -> (i32, i32, i32) {
    %c0_i32 = arith.constant 0 : i32
    %c0_i32_0 = arith.constant 0 : i32
    %c0_i32_1 = arith.constant 0 : i32
    return %arg0, %c0_i32, %c0_i32_0 : i32, i32, i32
  }
  func.func @transform_15(%arg0: i32) -> (i32, i32, i32) {
    %c0_i32 = arith.constant 0 : i32
    %c0_i32_0 = arith.constant 0 : i32
    %c0_i32_1 = arith.constant 0 : i32
    return %arg0, %c0_i32, %c0_i32_0 : i32, i32, i32
  }
  func.func @transform_16(%arg0: i32) -> (i32, i32, i32) {
    %c3_i32 = arith.constant 3 : i32
    %0 = arith.subi %c3_i32, %arg0 : i32
    %c0_i32 = arith.constant 0 : i32
    %c0_i32_0 = arith.constant 0 : i32
    %c0_i32_1 = arith.constant 0 : i32
    return %0, %c0_i32, %c0_i32_0 : i32, i32, i32
  }
  func.func @transform_17(%arg0: i32) -> (i32, i32) {
    %c0_i32 = arith.constant 0 : i32
    %c0_i32_0 = arith.constant 0 : i32
    %c0_i32_1 = arith.constant 0 : i32
    return %c0_i32, %c0_i32_0 : i32, i32
  }
  func.func @transform_18(%arg0: i32) -> (i32, i32) {
    %c0_i32 = arith.constant 0 : i32
    %c0_i32_0 = arith.constant 0 : i32
    %c0_i32_1 = arith.constant 0 : i32
    return %c0_i32, %c0_i32_0 : i32, i32
  }
}

</mosaic_0001>

<llo_original>
// kernel: vdet_forward.1
$region0: #{vdet_forward.1}
  #allocation0 [shape = 'u32[]', space=smem, size = 0x4, offset = 0x4, fixed_abs, tag = 'smem constant byte address 0x4 - core index']
  #allocation1 [shape = 'u32[144,128]{1,0:T(1,128)}', space=vmem, size = 0x12000, scoped, tag = 'internal scratch']
  #allocation2 [shape = 'f32[16,32]{1,0:T(8,128)}', space=vmem, size = 0x2000, scoped, tag = 'scratch operand']
  %s0 = inlined_call_operand.vmem [shape: f32[16,32], index: 0, kind: input, shape index: {}]
  %s1 = inlined_call_operand.vmem [shape: f32[2,8], index: 1, kind: input, shape index: {}]
  %s2 = inlined_call_operand.vmem [shape: f32[1,32], index: 2, kind: input, shape index: {}]
  %s3 = inlined_call_operand.vmem [shape: f32[1,32], index: 3, kind: input, shape index: {}]
  %s4 = inlined_call_operand.vmem [shape: f32[4,32,96], index: 4, kind: input, shape index: {}]
  %s5 = inlined_call_operand.vmem [shape: f32[4,1,96], index: 5, kind: input, shape index: {}]
  %s6 = inlined_call_operand.vmem [shape: f32[4,32,32], index: 6, kind: input, shape index: {}]
  %s7 = inlined_call_operand.vmem [shape: f32[4,1,32], index: 7, kind: input, shape index: {}]
  %s8 = inlined_call_operand.vmem [shape: f32[4,1,32], index: 8, kind: input, shape index: {}]
  %s9 = inlined_call_operand.vmem [shape: f32[4,1,32], index: 9, kind: input, shape index: {}]
  %s10 = inlined_call_operand.vmem [shape: f32[4,32,64], index: 10, kind: input, shape index: {}]
  %s11 = inlined_call_operand.vmem [shape: f32[4,1,64], index: 11, kind: input, shape index: {}]
  %s12 = inlined_call_operand.vmem [shape: f32[4,64,32], index: 12, kind: input, shape index: {}]
  %s13 = inlined_call_operand.vmem [shape: f32[4,1,32], index: 13, kind: input, shape index: {}]
  %s14 = inlined_call_operand.vmem [shape: f32[4,1,32], index: 14, kind: input, shape index: {}]
  %s15 = inlined_call_operand.vmem [shape: f32[4,1,32], index: 15, kind: input, shape index: {}]
  %s16 = inlined_call_operand.vmem [shape: f32[4,32,128], index: 16, kind: input, shape index: {}]
  %s17 = inlined_call_operand.vmem [shape: f32[1,128], index: 17, kind: input, shape index: {}]
  %s18 = inlined_call_operand.hbm [shape: f32[2,128], index: 18, kind: output, shape index: {}]
  %s19 = sld [smem:[#allocation0]]
  $region109: #{vdet_forward.1} parent=0
    _
  %s21 = ssub.s32 1, %s19
  %s22 = scalar_select 0, %s21, %s19
  $region1: #{vdet_forward.1} parent=0
    #allocation3 [shape = 'u8[1024]{0}', space=vmem, size = 0x400, scoped, tag = 'output window, operand 0, single buffered']
    #allocation4 [shape = 's32[2]{0}', space=sflag, size = 0x8, scoped, tag = 'scoped memory for vdet_forward.1']
    %23 = vsyncpa [#allocation4], 0
    loop: start=0, step=1, limit=6
    $region2: #{vdet_forward.1} parent=1 // loop_pre_header
      _
    $region3: #{vdet_forward.1} parent=1 // loop_header
      %s25 = sphi 0, %s29
      %p26 = scmp.ge.s32.totalorder %s25, 6
      %s33 = sphi 0, %s33
      %s35 = sphi 0, %s33
      %s36 = sphi 0, %s35
      %s50 = sphi 0, %s36
      %s54 = sphi 0, %s54
      %s56 = sphi 0, %s54
      %s57 = sphi 0, %s56
      %s71 = sphi 0, %s57
      %s75 = sphi 0, %s75
      %s77 = sphi 0, %s75
      %s78 = sphi 0, %s77
      %s92 = sphi 0, %s78
      %s96 = sphi 0, %s96
      %s98 = sphi 0, %s96
      %s99 = sphi 0, %s98
      %s113 = sphi 0, %s99
      %s119 = sphi 0, %s121
      %s122 = sphi 0, %s119
      %s123 = sphi 0, %s122
      %s139 = sphi 0, %s123
      %s145 = sphi 0, %s147
      %s148 = sphi 0, %s145
      %s149 = sphi 0, %s148
      %s165 = sphi 0, %s149
      %s171 = sphi 0, %s173
      %s174 = sphi 0, %s171
      %s175 = sphi 0, %s174
      %s191 = sphi 0, %s175
      %s197 = sphi 0, %s199
      %s200 = sphi 0, %s197
      %s201 = sphi 0, %s200
      %s217 = sphi 0, %s201
      %s223 = sphi 0, %s225
      %s226 = sphi 0, %s223
      %s227 = sphi 0, %s226
      %s243 = sphi 0, %s227
      %s249 = sphi 0, %s251
      %s252 = sphi 0, %s249
      %s253 = sphi 0, %s252
      %s269 = sphi 0, %s253
      %s275 = sphi 0, %s277
      %s278 = sphi 0, %s275
      %s279 = sphi 0, %s278
      %s295 = sphi 0, %s279
      %s301 = sphi 0, %s303
      %s304 = sphi 0, %s301
      %s305 = sphi 0, %s304
      %s321 = sphi 0, %s305
      %s327 = sphi 0, %s329
      %s330 = sphi 0, %s327
      %s331 = sphi 0, %s330
      %s347 = sphi 0, %s331
      %s353 = sphi 0, %s355
      %s356 = sphi 0, %s353
      %s357 = sphi 0, %s356
      %s373 = sphi 0, %s357
      %s379 = sphi 0, %s381
      %s382 = sphi 0, %s379
      %s383 = sphi 0, %s382
      %s399 = sphi 0, %s383
      %s405 = sphi 0, %s407
      %s408 = sphi 0, %s405
      %s409 = sphi 0, %s408
      %s425 = sphi 0, %s409
      %s433 = sphi 0, %s435
      %s436 = sphi 0, %s433
      %s437 = sphi 0, %s436
      %s453 = sphi 0, %s437
      %s457 = sphi 0, %s457
      %s459 = sphi 0, %s457
      %s460 = sphi 0, %s459
      %s474 = sphi 0, %s460
      %s478 = sphi 0, %s478
      %s480 = sphi 0, %s478
      %s481 = sphi 0, %s480
      %s495 = sphi 0, %s481
    $region4: #{vdet_forward.1} parent=1 // loop_header_branch
      %28 = sbr.rel (%p26) target = $region8
    $region5: #{vdet_forward.1} parent=1 // loop_body
      %s30 = ssub.s32 %s25, 1
      %s31 = ssub.s32 %s25, 2
      %s32 = sadd.s32 %s25, 1
      %s34 = sadd.s32 %s33, 1
      %p37 = scmp.eq.s32.totalorder %s25, 3
      %p38 = scmp.ne.s32.totalorder %s33, %s35
      %p39 = scmp.eq.s32.totalorder %s25, 0
      %p40 = por %p38, %p39
      %p41 = scmp.ne.s32.totalorder %s33, %s35
      %p42 = scmp.eq.s32.totalorder %s30, 3
      %p43 = por %p41, %p42
      %p44 = scmp.ne.s32.totalorder %s35, %s36
      %p45 = scmp.eq.s32.totalorder %s30, 0
      %p46 = por %p44, %p45
      %p47 = scmp.ne.s32.totalorder %s35, %s36
      %p48 = scmp.eq.s32.totalorder %s31, 3
      %p49 = por %p47, %p48
      %p51 = scmp.ne.s32.totalorder %s36, %s50
      %p52 = scmp.eq.s32.totalorder %s31, 0
      %p53 = por %p51, %p52
      %s55 = sadd.s32 %s54, 1
      %p58 = scmp.eq.s32.totalorder %s25, 3
      %p59 = scmp.ne.s32.totalorder %s54, %s56
      %p60 = scmp.eq.s32.totalorder %s25, 0
      %p61 = por %p59, %p60
      %p62 = scmp.ne.s32.totalorder %s54, %s56
      %p63 = scmp.eq.s32.totalorder %s30, 3
      %p64 = por %p62, %p63
      %p65 = scmp.ne.s32.totalorder %s56, %s57
      %p66 = scmp.eq.s32.totalorder %s30, 0
      %p67 = por %p65, %p66
      %p68 = scmp.ne.s32.totalorder %s56, %s57
      %p69 = scmp.eq.s32.totalorder %s31, 3
      %p70 = por %p68, %p69
      %p72 = scmp.ne.s32.totalorder %s57, %s71
      %p73 = scmp.eq.s32.totalorder %s31, 0
      %p74 = por %p72, %p73
      %s76 = sadd.s32 %s75, 1
      %p79 = scmp.eq.s32.totalorder %s25, 3
      %p80 = scmp.ne.s32.totalorder %s75, %s77
      %p81 = scmp.eq.s32.totalorder %s25, 0
      %p82 = por %p80, %p81
      %p83 = scmp.ne.s32.totalorder %s75, %s77
      %p84 = scmp.eq.s32.totalorder %s30, 3
      %p85 = por %p83, %p84
      %p86 = scmp.ne.s32.totalorder %s77, %s78
      %p87 = scmp.eq.s32.totalorder %s30, 0
      %p88 = por %p86, %p87
      %p89 = scmp.ne.s32.totalorder %s77, %s78
      %p90 = scmp.eq.s32.totalorder %s31, 3
      %p91 = por %p89, %p90
      %p93 = scmp.ne.s32.totalorder %s78, %s92
      %p94 = scmp.eq.s32.totalorder %s31, 0
      %p95 = por %p93, %p94
      %s97 = sadd.s32 %s96, 1
      %p100 = scmp.eq.s32.totalorder %s25, 3
      %p101 = scmp.ne.s32.totalorder %s96, %s98
      %p102 = scmp.eq.s32.totalorder %s25, 0
      %p103 = por %p101, %p102
      %p104 = scmp.ne.s32.totalorder %s96, %s98
      %p105 = scmp.eq.s32.totalorder %s30, 3
      %p106 = por %p104, %p105
      %p107 = scmp.ne.s32.totalorder %s98, %s99
      %p108 = scmp.eq.s32.totalorder %s30, 0
      %p109 = por %p107, %p108
      %p110 = scmp.ne.s32.totalorder %s98, %s99
      %p111 = scmp.eq.s32.totalorder %s31, 3
      %p112 = por %p110, %p111
      %p114 = scmp.ne.s32.totalorder %s99, %s113
      %p115 = scmp.eq.s32.totalorder %s31, 0
      %p116 = por %p114, %p115
      %s117 = ssub.s32 %s25, %s32
      %p118 = scmp.eq.s32.totalorder %s117, 0
      %s120 = sadd.s32 %s119, 1
      %s121 = scalar_select %p118, %s119, %s120
      %p124 = pneg %p118
      %p125 = scmp.eq.s32.totalorder %s25, 3
      %p126 = por %p124, %p125
      %p127 = scmp.ne.s32.totalorder %s119, %s122
      %p128 = scmp.eq.s32.totalorder %s25, 0
      %p129 = por %p127, %p128
      %p130 = scmp.ne.s32.totalorder %s119, %s122
      %p131 = scmp.eq.s32.totalorder %s30, 3
      %p132 = por %p130, %p131
      %p133 = scmp.ne.s32.totalorder %s122, %s123
      %p134 = scmp.eq.s32.totalorder %s30, 0
      %p135 = por %p133, %p134
      %p136 = scmp.ne.s32.totalorder %s122, %s123
      %p137 = scmp.eq.s32.totalorder %s31, 3
      %p138 = por %p136, %p137
      %p140 = scmp.ne.s32.totalorder %s123, %s139
      %p141 = scmp.eq.s32.totalorder %s31, 0
      %p142 = por %p140, %p141
      %s143 = ssub.s32 %s25, %s32
      %p144 = scmp.eq.s32.totalorder %s143, 0
      %s146 = sadd.s32 %s145, 1
      %s147 = scalar_select %p144, %s145, %s146
      %p150 = pneg %p144
      %p151 = scmp.eq.s32.totalorder %s25, 3
      %p152 = por %p150, %p151
      %p153 = scmp.ne.s32.totalorder %s145, %s148
      %p154 = scmp.eq.s32.totalorder %s25, 0
      %p155 = por %p153, %p154
      %p156 = scmp.ne.s32.totalorder %s145, %s148
      %p157 = scmp.eq.s32.totalorder %s30, 3
      %p158 = por %p156, %p157
      %p159 = scmp.ne.s32.totalorder %s148, %s149
      %p160 = scmp.eq.s32.totalorder %s30, 0
      %p161 = por %p159, %p160
      %p162 = scmp.ne.s32.totalorder %s148, %s149
      %p163 = scmp.eq.s32.totalorder %s31, 3
      %p164 = por %p162, %p163
      %p166 = scmp.ne.s32.totalorder %s149, %s165
      %p167 = scmp.eq.s32.totalorder %s31, 0
      %p168 = por %p166, %p167
      %s169 = ssub.s32 %s25, %s32
      %p170 = scmp.eq.s32.totalorder %s169, 0
      %s172 = sadd.s32 %s171, 1
      %s173 = scalar_select %p170, %s171, %s172
      %p176 = pneg %p170
      %p177 = scmp.eq.s32.totalorder %s25, 3
      %p178 = por %p176, %p177
      %p179 = scmp.ne.s32.totalorder %s171, %s174
      %p180 = scmp.eq.s32.totalorder %s25, 0
      %p181 = por %p179, %p180
      %p182 = scmp.ne.s32.totalorder %s171, %s174
      %p183 = scmp.eq.s32.totalorder %s30, 3
      %p184 = por %p182, %p183
      %p185 = scmp.ne.s32.totalorder %s174, %s175
      %p186 = scmp.eq.s32.totalorder %s30, 0
      %p187 = por %p185, %p186
      %p188 = scmp.ne.s32.totalorder %s174, %s175
      %p189 = scmp.eq.s32.totalorder %s31, 3
      %p190 = por %p188, %p189
      %p192 = scmp.ne.s32.totalorder %s175, %s191
      %p193 = scmp.eq.s32.totalorder %s31, 0
      %p194 = por %p192, %p193
      %s195 = ssub.s32 %s25, %s32
      %p196 = scmp.eq.s32.totalorder %s195, 0
      %s198 = sadd.s32 %s197, 1
      %s199 = scalar_select %p196, %s197, %s198
      %p202 = pneg %p196
      %p203 = scmp.eq.s32.totalorder %s25, 3
      %p204 = por %p202, %p203
      %p205 = scmp.ne.s32.totalorder %s197, %s200
      %p206 = scmp.eq.s32.totalorder %s25, 0
      %p207 = por %p205, %p206
      %p208 = scmp.ne.s32.totalorder %s197, %s200
      %p209 = scmp.eq.s32.totalorder %s30, 3
      %p210 = por %p208, %p209
      %p211 = scmp.ne.s32.totalorder %s200, %s201
      %p212 = scmp.eq.s32.totalorder %s30, 0
      %p213 = por %p211, %p212
      %p214 = scmp.ne.s32.totalorder %s200, %s201
      %p215 = scmp.eq.s32.totalorder %s31, 3
      %p216 = por %p214, %p215
      %p218 = scmp.ne.s32.totalorder %s201, %s217
      %p219 = scmp.eq.s32.totalorder %s31, 0
      %p220 = por %p218, %p219
      %s221 = ssub.s32 %s25, %s32
      %p222 = scmp.eq.s32.totalorder %s221, 0
      %s224 = sadd.s32 %s223, 1
      %s225 = scalar_select %p222, %s223, %s224
      %p228 = pneg %p222
      %p229 = scmp.eq.s32.totalorder %s25, 3
      %p230 = por %p228, %p229
      %p231 = scmp.ne.s32.totalorder %s223, %s226
      %p232 = scmp.eq.s32.totalorder %s25, 0
      %p233 = por %p231, %p232
      %p234 = scmp.ne.s32.totalorder %s223, %s226
      %p235 = scmp.eq.s32.totalorder %s30, 3
      %p236 = por %p234, %p235
      %p237 = scmp.ne.s32.totalorder %s226, %s227
      %p238 = scmp.eq.s32.totalorder %s30, 0
      %p239 = por %p237, %p238
      %p240 = scmp.ne.s32.totalorder %s226, %s227
      %p241 = scmp.eq.s32.totalorder %s31, 3
      %p242 = por %p240, %p241
      %p244 = scmp.ne.s32.totalorder %s227, %s243
      %p245 = scmp.eq.s32.totalorder %s31, 0
      %p246 = por %p244, %p245
      %s247 = ssub.s32 %s25, %s32
      %p248 = scmp.eq.s32.totalorder %s247, 0
      %s250 = sadd.s32 %s249, 1
      %s251 = scalar_select %p248, %s249, %s250
      %p254 = pneg %p248
      %p255 = scmp.eq.s32.totalorder %s25, 3
      %p256 = por %p254, %p255
      %p257 = scmp.ne.s32.totalorder %s249, %s252
      %p258 = scmp.eq.s32.totalorder %s25, 0
      %p259 = por %p257, %p258
      %p260 = scmp.ne.s32.totalorder %s249, %s252
      %p261 = scmp.eq.s32.totalorder %s30, 3
      %p262 = por %p260, %p261
      %p263 = scmp.ne.s32.totalorder %s252, %s253
      %p264 = scmp.eq.s32.totalorder %s30, 0
      %p265 = por %p263, %p264
      %p266 = scmp.ne.s32.totalorder %s252, %s253
      %p267 = scmp.eq.s32.totalorder %s31, 3
      %p268 = por %p266, %p267
      %p270 = scmp.ne.s32.totalorder %s253, %s269
      %p271 = scmp.eq.s32.totalorder %s31, 0
      %p272 = por %p270, %p271
      %s273 = ssub.s32 %s25, %s32
      %p274 = scmp.eq.s32.totalorder %s273, 0
      %s276 = sadd.s32 %s275, 1
      %s277 = scalar_select %p274, %s275, %s276
      %p280 = pneg %p274
      %p281 = scmp.eq.s32.totalorder %s25, 3
      %p282 = por %p280, %p281
      %p283 = scmp.ne.s32.totalorder %s275, %s278
      %p284 = scmp.eq.s32.totalorder %s25, 0
      %p285 = por %p283, %p284
      %p286 = scmp.ne.s32.totalorder %s275, %s278
      %p287 = scmp.eq.s32.totalorder %s30, 3
      %p288 = por %p286, %p287
      %p289 = scmp.ne.s32.totalorder %s278, %s279
      %p290 = scmp.eq.s32.totalorder %s30, 0
      %p291 = por %p289, %p290
      %p292 = scmp.ne.s32.totalorder %s278, %s279
      %p293 = scmp.eq.s32.totalorder %s31, 3
      %p294 = por %p292, %p293
      %p296 = scmp.ne.s32.totalorder %s279, %s295
      %p297 = scmp.eq.s32.totalorder %s31, 0
      %p298 = por %p296, %p297
      %s299 = ssub.s32 %s25, %s32
      %p300 = scmp.eq.s32.totalorder %s299, 0
      %s302 = sadd.s32 %s301, 1
      %s303 = scalar_select %p300, %s301, %s302
      %p306 = pneg %p300
      %p307 = scmp.eq.s32.totalorder %s25, 3
      %p308 = por %p306, %p307
      %p309 = scmp.ne.s32.totalorder %s301, %s304
      %p310 = scmp.eq.s32.totalorder %s25, 0
      %p311 = por %p309, %p310
      %p312 = scmp.ne.s32.totalorder %s301, %s304
      %p313 = scmp.eq.s32.totalorder %s30, 3
      %p314 = por %p312, %p313
      %p315 = scmp.ne.s32.totalorder %s304, %s305
      %p316 = scmp.eq.s32.totalorder %s30, 0
      %p317 = por %p315, %p316
      %p318 = scmp.ne.s32.totalorder %s304, %s305
      %p319 = scmp.eq.s32.totalorder %s31, 3
      %p320 = por %p318, %p319
      %p322 = scmp.ne.s32.totalorder %s305, %s321
      %p323 = scmp.eq.s32.totalorder %s31, 0
      %p324 = por %p322, %p323
      %s325 = ssub.s32 %s25, %s32
      %p326 = scmp.eq.s32.totalorder %s325, 0
      %s328 = sadd.s32 %s327, 1
      %s329 = scalar_select %p326, %s327, %s328
      %p332 = pneg %p326
      %p333 = scmp.eq.s32.totalorder %s25, 3
      %p334 = por %p332, %p333
      %p335 = scmp.ne.s32.totalorder %s327, %s330
      %p336 = scmp.eq.s32.totalorder %s25, 0
      %p337 = por %p335, %p336
      %p338 = scmp.ne.s32.totalorder %s327, %s330
      %p339 = scmp.eq.s32.totalorder %s30, 3
      %p340 = por %p338, %p339
      %p341 = scmp.ne.s32.totalorder %s330, %s331
      %p342 = scmp.eq.s32.totalorder %s30, 0
      %p343 = por %p341, %p342
      %p344 = scmp.ne.s32.totalorder %s330, %s331
      %p345 = scmp.eq.s32.totalorder %s31, 3
      %p346 = por %p344, %p345
      %p348 = scmp.ne.s32.totalorder %s331, %s347
      %p349 = scmp.eq.s32.totalorder %s31, 0
      %p350 = por %p348, %p349
      %s351 = ssub.s32 %s25, %s32
      %p352 = scmp.eq.s32.totalorder %s351, 0
      %s354 = sadd.s32 %s353, 1
      %s355 = scalar_select %p352, %s353, %s354
      %p358 = pneg %p352
      %p359 = scmp.eq.s32.totalorder %s25, 3
      %p360 = por %p358, %p359
      %p361 = scmp.ne.s32.totalorder %s353, %s356
      %p362 = scmp.eq.s32.totalorder %s25, 0
      %p363 = por %p361, %p362
      %p364 = scmp.ne.s32.totalorder %s353, %s356
      %p365 = scmp.eq.s32.totalorder %s30, 3
      %p366 = por %p364, %p365
      %p367 = scmp.ne.s32.totalorder %s356, %s357
      %p368 = scmp.eq.s32.totalorder %s30, 0
      %p369 = por %p367, %p368
      %p370 = scmp.ne.s32.totalorder %s356, %s357
      %p371 = scmp.eq.s32.totalorder %s31, 3
      %p372 = por %p370, %p371
      %p374 = scmp.ne.s32.totalorder %s357, %s373
      %p375 = scmp.eq.s32.totalorder %s31, 0
      %p376 = por %p374, %p375
      %s377 = ssub.s32 %s25, %s32
      %p378 = scmp.eq.s32.totalorder %s377, 0
      %s380 = sadd.s32 %s379, 1
      %s381 = scalar_select %p378, %s379, %s380
      %p384 = pneg %p378
      %p385 = scmp.eq.s32.totalorder %s25, 3
      %p386 = por %p384, %p385
      %p387 = scmp.ne.s32.totalorder %s379, %s382
      %p388 = scmp.eq.s32.totalorder %s25, 0
      %p389 = por %p387, %p388
      %p390 = scmp.ne.s32.totalorder %s379, %s382
      %p391 = scmp.eq.s32.totalorder %s30, 3
      %p392 = por %p390, %p391
      %p393 = scmp.ne.s32.totalorder %s382, %s383
      %p394 = scmp.eq.s32.totalorder %s30, 0
      %p395 = por %p393, %p394
      %p396 = scmp.ne.s32.totalorder %s382, %s383
      %p397 = scmp.eq.s32.totalorder %s31, 3
      %p398 = por %p396, %p397
      %p400 = scmp.ne.s32.totalorder %s383, %s399
      %p401 = scmp.eq.s32.totalorder %s31, 0
      %p402 = por %p400, %p401
      %s403 = ssub.s32 %s25, %s32
      %p404 = scmp.eq.s32.totalorder %s403, 0
      %s406 = sadd.s32 %s405, 1
      %s407 = scalar_select %p404, %s405, %s406
      %p410 = pneg %p404
      %p411 = scmp.eq.s32.totalorder %s25, 3
      %p412 = por %p410, %p411
      %p413 = scmp.ne.s32.totalorder %s405, %s408
      %p414 = scmp.eq.s32.totalorder %s25, 0
      %p415 = por %p413, %p414
      %p416 = scmp.ne.s32.totalorder %s405, %s408
      %p417 = scmp.eq.s32.totalorder %s30, 3
      %p418 = por %p416, %p417
      %p419 = scmp.ne.s32.totalorder %s408, %s409
      %p420 = scmp.eq.s32.totalorder %s30, 0
      %p421 = por %p419, %p420
      %p422 = scmp.ne.s32.totalorder %s408, %s409
      %p423 = scmp.eq.s32.totalorder %s31, 3
      %p424 = por %p422, %p423
      %p426 = scmp.ne.s32.totalorder %s409, %s425
      %p427 = scmp.eq.s32.totalorder %s31, 0
      %p428 = por %p426, %p427
      %s429 = ssub.s32 3, %s25
      %s430 = ssub.s32 3, %s32
      %s431 = ssub.s32 %s429, %s430
      %p432 = scmp.eq.s32.totalorder %s431, 0
      %s434 = sadd.s32 %s433, 1
      %s435 = scalar_select %p432, %s433, %s434
      %p438 = pneg %p432
      %p439 = scmp.eq.s32.totalorder %s25, 3
      %p440 = por %p438, %p439
      %p441 = scmp.ne.s32.totalorder %s433, %s436
      %p442 = scmp.eq.s32.totalorder %s25, 0
      %p443 = por %p441, %p442
      %p444 = scmp.ne.s32.totalorder %s433, %s436
      %p445 = scmp.eq.s32.totalorder %s30, 3
      %p446 = por %p444, %p445
      %p447 = scmp.ne.s32.totalorder %s436, %s437
      %p448 = scmp.eq.s32.totalorder %s30, 0
      %p449 = por %p447, %p448
      %p450 = scmp.ne.s32.totalorder %s436, %s437
      %p451 = scmp.eq.s32.totalorder %s31, 3
      %p452 = por %p450, %p451
      %p454 = scmp.ne.s32.totalorder %s437, %s453
      %p455 = scmp.eq.s32.totalorder %s31, 0
      %p456 = por %p454, %p455
      %s458 = sadd.s32 %s457, 1
      %p461 = scmp.eq.s32.totalorder %s25, 3
      %p462 = scmp.ne.s32.totalorder %s457, %s459
      %p463 = scmp.eq.s32.totalorder %s25, 0
      %p464 = por %p462, %p463
      %p465 = scmp.ne.s32.totalorder %s457, %s459
      %p466 = scmp.eq.s32.totalorder %s30, 3
      %p467 = por %p465, %p466
      %p468 = scmp.ne.s32.totalorder %s459, %s460
      %p469 = scmp.eq.s32.totalorder %s30, 0
      %p470 = por %p468, %p469
      %p471 = scmp.ne.s32.totalorder %s459, %s460
      %p472 = scmp.eq.s32.totalorder %s31, 3
      %p473 = por %p471, %p472
      %p475 = scmp.ne.s32.totalorder %s460, %s474
      %p476 = scmp.eq.s32.totalorder %s31, 0
      %p477 = por %p475, %p476
      %s479 = sadd.s32 %s478, 1
      %p482 = scmp.eq.s32.totalorder %s25, 3
      %p483 = scmp.ne.s32.totalorder %s478, %s480
      %p484 = scmp.eq.s32.totalorder %s25, 0
      %p485 = por %p483, %p484
      %p486 = scmp.ne.s32.totalorder %s478, %s480
      %p487 = scmp.eq.s32.totalorder %s30, 3
      %p488 = por %p486, %p487
      %p489 = scmp.ne.s32.totalorder %s480, %s481
      %p490 = scmp.eq.s32.totalorder %s30, 0
      %p491 = por %p489, %p490
      %p492 = scmp.ne.s32.totalorder %s480, %s481
      %p493 = scmp.eq.s32.totalorder %s31, 3
      %p494 = por %p492, %p493
      %p496 = scmp.ne.s32.totalorder %s481, %s495
      %p497 = scmp.eq.s32.totalorder %s31, 0
      %p498 = por %p496, %p497
      %p499 = scmp.le.s32.totalorder 1, %s25
      %p500 = scmp.lt.s32.totalorder %s25, 5
      %p501 = pnand %p499, %p500
      %p502 = pneg %p501
      // Predicated region
      $region9: #{vdet_forward.1} parent=5 // pred_check
        _
      $region10: #{vdet_forward.1} parent=5 // pred_check_branch
        %504 = sbr.rel (%p501) target = $region12
      $region11: #{vdet_forward.1} parent=5 // pred_region
        %s505 = ssub.s32 %s25, 1
        // Predicated region
        $region13: #{vdet_forward.1} parent=11 // pred_check
          %p506 = pneg %p46
        $region14: #{vdet_forward.1} parent=11 // pred_check_branch
          %508 = sbr.rel (%p506) target = $region16
        $region15: #{vdet_forward.1} parent=11 // pred_region
          _
        $region16: #{vdet_forward.1} parent=11 // pred_fallthru
          _
        // Predicated region
        $region17: #{vdet_forward.1} parent=11 // pred_check
          %p509 = pneg %p67
        $region18: #{vdet_forward.1} parent=11 // pred_check_branch
          %511 = sbr.rel (%p509) target = $region20
        $region19: #{vdet_forward.1} parent=11 // pred_region
          _
        $region20: #{vdet_forward.1} parent=11 // pred_fallthru
          _
        // Predicated region
        $region21: #{vdet_forward.1} parent=11 // pred_check
          %p512 = pneg %p88
        $region22: #{vdet_forward.1} parent=11 // pred_check_branch
          %514 = sbr.rel (%p512) target = $region24
        $region23: #{vdet_forward.1} parent=11 // pred_region
          _
        $region24: #{vdet_forward.1} parent=11 // pred_fallthru
          _
        // Predicated region
        $region25: #{vdet_forward.1} parent=11 // pred_check
          %p515 = pneg %p109
        $region26: #{vdet_forward.1} parent=11 // pred_check_branch
          %517 = sbr.rel (%p515) target = $region28
        $region27: #{vdet_forward.1} parent=11 // pred_region
          _
        $region28: #{vdet_forward.1} parent=11 // pred_fallthru
          _
        // Predicated region
        $region29: #{vdet_forward.1} parent=11 // pred_check
          %p518 = pneg %p470
        $region30: #{vdet_forward.1} parent=11 // pred_check_branch
          %520 = sbr.rel (%p518) target = $region32
        $region31: #{vdet_forward.1} parent=11 // pred_region
          _
        $region32: #{vdet_forward.1} parent=11 // pred_fallthru
          _
      $region12: #{vdet_forward.1} parent=5 // pred_fallthru
        _
      %p521 = scmp.lt.s32.totalorder %s25, 4
      // Predicated region
      $region33: #{vdet_forward.1} parent=5 // pred_check
        %p522 = pneg %p521
      $region34: #{vdet_forward.1} parent=5 // pred_check_branch
        %524 = sbr.rel (%p522) target = $region36
      $region35: #{vdet_forward.1} parent=5 // pred_region
        // Predicated region
        $region37: #{vdet_forward.1} parent=35 // pred_check
          %p525 = pneg %p129
        $region38: #{vdet_forward.1} parent=35 // pred_check_branch
          %527 = sbr.rel (%p525) target = $region40
        $region39: #{vdet_forward.1} parent=35 // pred_region
          %p528 = scmp.lt.s32.totalorder %s25, 3
          %s529 = scalar_select %p528, %s25, 3
          %s530 = smul.addr %s529, 4
          %s531 = smul.addr %s530, 8
          %s532 = scalar_lea.vmem %s4, %s531
        $region40: #{vdet_forward.1} parent=35 // pred_fallthru
          _
        // Predicated region
        $region41: #{vdet_forward.1} parent=35 // pred_check
          %p533 = pneg %p155
        $region42: #{vdet_forward.1} parent=35 // pred_check_branch
          %535 = sbr.rel (%p533) target = $region44
        $region43: #{vdet_forward.1} parent=35 // pred_region
          %p536 = scmp.lt.s32.totalorder %s25, 3
          %s537 = scalar_select %p536, %s25, 3
          %s538 = scalar_lea.vmem %s5, %s537
        $region44: #{vdet_forward.1} parent=35 // pred_fallthru
          _
        // Predicated region
        $region45: #{vdet_forward.1} parent=35 // pred_check
          %p539 = pneg %p181
        $region46: #{vdet_forward.1} parent=35 // pred_check_branch
          %541 = sbr.rel (%p539) target = $region48
        $region47: #{vdet_forward.1} parent=35 // pred_region
          %p542 = scmp.lt.s32.totalorder %s25, 3
          %s543 = scalar_select %p542, %s25, 3
          %s544 = smul.addr %s543, 4
          %s545 = smul.addr %s544, 8
          %s546 = scalar_lea.vmem %s6, %s545
        $region48: #{vdet_forward.1} parent=35 // pred_fallthru
          _
        // Predicated region
        $region49: #{vdet_forward.1} parent=35 // pred_check
          %p547 = pneg %p207
        $region50: #{vdet_forward.1} parent=35 // pred_check_branch
          %549 = sbr.rel (%p547) target = $region52
        $region51: #{vdet_forward.1} parent=35 // pred_region
          %p550 = scmp.lt.s32.totalorder %s25, 3
          %s551 = scalar_select %p550, %s25, 3
          %s552 = scalar_lea.vmem %s7, %s551
        $region52: #{vdet_forward.1} parent=35 // pred_fallthru
          _
        // Predicated region
        $region53: #{vdet_forward.1} parent=35 // pred_check
          %p553 = pneg %p233
        $region54: #{vdet_forward.1} parent=35 // pred_check_branch
          %555 = sbr.rel (%p553) target = $region56
        $region55: #{vdet_forward.1} parent=35 // pred_region
          %p556 = scmp.lt.s32.totalorder %s25, 3
          %s557 = scalar_select %p556, %s25, 3
          %s558 = scalar_lea.vmem %s8, %s557
        $region56: #{vdet_forward.1} parent=35 // pred_fallthru
          _
        // Predicated region
        $region57: #{vdet_forward.1} parent=35 // pred_check
          %p559 = pneg %p259
        $region58: #{vdet_forward.1} parent=35 // pred_check_branch
          %561 = sbr.rel (%p559) target = $region60
        $region59: #{vdet_forward.1} parent=35 // pred_region
          %p562 = scmp.lt.s32.totalorder %s25, 3
          %s563 = scalar_select %p562, %s25, 3
          %s564 = scalar_lea.vmem %s9, %s563
        $region60: #{vdet_forward.1} parent=35 // pred_fallthru
          _
        // Predicated region
        $region61: #{vdet_forward.1} parent=35 // pred_check
          %p565 = pneg %p285
        $region62: #{vdet_forward.1} parent=35 // pred_check_branch
          %567 = sbr.rel (%p565) target = $region64
        $region63: #{vdet_forward.1} parent=35 // pred_region
          %p568 = scmp.lt.s32.totalorder %s25, 3
          %s569 = scalar_select %p568, %s25, 3
          %s570 = smul.addr %s569, 4
          %s571 = smul.addr %s570, 8
          %s572 = scalar_lea.vmem %s10, %s571
        $region64: #{vdet_forward.1} parent=35 // pred_fallthru
          _
        // Predicated region
        $region65: #{vdet_forward.1} parent=35 // pred_check
          %p573 = pneg %p311
        $region66: #{vdet_forward.1} parent=35 // pred_check_branch
          %575 = sbr.rel (%p573) target = $region68
        $region67: #{vdet_forward.1} parent=35 // pred_region
          %p576 = scmp.lt.s32.totalorder %s25, 3
          %s577 = scalar_select %p576, %s25, 3
          %s578 = scalar_lea.vmem %s11, %s577
        $region68: #{vdet_forward.1} parent=35 // pred_fallthru
          _
        // Predicated region
        $region69: #{vdet_forward.1} parent=35 // pred_check
          %p579 = pneg %p337
        $region70: #{vdet_forward.1} parent=35 // pred_check_branch
          %581 = sbr.rel (%p579) target = $region72
        $region71: #{vdet_forward.1} parent=35 // pred_region
          %p582 = scmp.lt.s32.totalorder %s25, 3
          %s583 = scalar_select %p582, %s25, 3
          %s584 = smul.addr %s583, 8
          %s585 = smul.addr %s584, 8
          %s586 = scalar_lea.vmem %s12, %s585
        $region72: #{vdet_forward.1} parent=35 // pred_fallthru
          _
        // Predicated region
        $region73: #{vdet_forward.1} parent=35 // pred_check
          %p587 = pneg %p363
        $region74: #{vdet_forward.1} parent=35 // pred_check_branch
          %589 = sbr.rel (%p587) target = $region76
        $region75: #{vdet_forward.1} parent=35 // pred_region
          %p590 = scmp.lt.s32.totalorder %s25, 3
          %s591 = scalar_select %p590, %s25, 3
          %s592 = scalar_lea.vmem %s13, %s591
        $region76: #{vdet_forward.1} parent=35 // pred_fallthru
          _
        // Predicated region
        $region77: #{vdet_forward.1} parent=35 // pred_check
          %p593 = pneg %p389
        $region78: #{vdet_forward.1} parent=35 // pred_check_branch
          %595 = sbr.rel (%p593) target = $region80
        $region79: #{vdet_forward.1} parent=35 // pred_region
          %p596 = scmp.lt.s32.totalorder %s25, 3
          %s597 = scalar_select %p596, %s25, 3
          %s598 = scalar_lea.vmem %s14, %s597
        $region80: #{vdet_forward.1} parent=35 // pred_fallthru
          _
        // Predicated region
        $region81: #{vdet_forward.1} parent=35 // pred_check
          %p599 = pneg %p415
        $region82: #{vdet_forward.1} parent=35 // pred_check_branch
          %601 = sbr.rel (%p599) target = $region84
        $region83: #{vdet_forward.1} parent=35 // pred_region
          %p602 = scmp.lt.s32.totalorder %s25, 3
          %s603 = scalar_select %p602, %s25, 3
          %s604 = scalar_lea.vmem %s15, %s603
        $region84: #{vdet_forward.1} parent=35 // pred_fallthru
          _
        // Predicated region
        $region85: #{vdet_forward.1} parent=35 // pred_check
          %p605 = pneg %p443
        $region86: #{vdet_forward.1} parent=35 // pred_check_branch
          %607 = sbr.rel (%p605) target = $region88
        $region87: #{vdet_forward.1} parent=35 // pred_region
          %s608 = ssub.s32 3, %s25
          %p609 = scmp.lt.s32.totalorder %s608, 3
          %s610 = scalar_select %p609, %s608, 3
          %s611 = smul.addr %s610, 4
          %s612 = smul.addr %s611, 8
          %s613 = scalar_lea.vmem %s16, %s612
          %s614 = ssub.s32 3, %s25
        $region88: #{vdet_forward.1} parent=35 // pred_fallthru
          _
      $region36: #{vdet_forward.1} parent=5 // pred_fallthru
        _
      %p615 = scmp.le.s32.totalorder 1, %s25
      %p616 = scmp.lt.s32.totalorder %s25, 5
      %p617 = pnand %p615, %p616
      %p618 = pneg %p617
      // Predicated region
      $region89: #{vdet_forward.1} parent=5 // pred_check
        _
      $region90: #{vdet_forward.1} parent=5 // pred_check_branch
        %620 = sbr.rel (%p617) target = $region92
      $region91: #{vdet_forward.1} parent=5 // pred_region
        %s621 = ssub.s32 %s25, 1
        %p622 = pneg %p46
        %p623 = pneg %p43
        %p624 = pneg %p67
        %p625 = pneg %p64
        %p626 = pneg %p88
        %p627 = pneg %p85
        %p628 = pneg %p109
        %p629 = pneg %p106
        %p630 = scmp.lt.s32.totalorder %s30, 3
        %s631 = scalar_select %p630, %s30, 3
        %s632 = smul.addr %s631, 4
        %s633 = smul.addr %s632, 8
        %s634 = scalar_lea.vmem %s4, %s633
        %p635 = pneg %p135
        %p636 = pneg %p132
        %p637 = scmp.lt.s32.totalorder %s30, 3
        %s638 = scalar_select %p637, %s30, 3
        %s639 = scalar_lea.vmem %s5, %s638
        %p640 = pneg %p161
        %p641 = pneg %p158
        %p642 = scmp.lt.s32.totalorder %s30, 3
        %s643 = scalar_select %p642, %s30, 3
        %s644 = smul.addr %s643, 4
        %s645 = smul.addr %s644, 8
        %s646 = scalar_lea.vmem %s6, %s645
        %p647 = pneg %p187
        %p648 = pneg %p184
        %p649 = scmp.lt.s32.totalorder %s30, 3
        %s650 = scalar_select %p649, %s30, 3
        %s651 = scalar_lea.vmem %s7, %s650
        %p652 = pneg %p213
        %p653 = pneg %p210
        %p654 = scmp.lt.s32.totalorder %s30, 3
        %s655 = scalar_select %p654, %s30, 3
        %s656 = scalar_lea.vmem %s8, %s655
        %p657 = pneg %p239
        %p658 = pneg %p236
        %p659 = scmp.lt.s32.totalorder %s30, 3
        %s660 = scalar_select %p659, %s30, 3
        %s661 = scalar_lea.vmem %s9, %s660
        %p662 = pneg %p265
        %p663 = pneg %p262
        %p664 = scmp.lt.s32.totalorder %s30, 3
        %s665 = scalar_select %p664, %s30, 3
        %s666 = smul.addr %s665, 4
        %s667 = smul.addr %s666, 8
        %s668 = scalar_lea.vmem %s10, %s667
        %p669 = pneg %p291
        %p670 = pneg %p288
        %p671 = scmp.lt.s32.totalorder %s30, 3
        %s672 = scalar_select %p671, %s30, 3
        %s673 = scalar_lea.vmem %s11, %s672
        %p674 = pneg %p317
        %p675 = pneg %p314
        %p676 = scmp.lt.s32.totalorder %s30, 3
        %s677 = scalar_select %p676, %s30, 3
        %s678 = smul.addr %s677, 8
        %s679 = smul.addr %s678, 8
        %s680 = scalar_lea.vmem %s12, %s679
        %p681 = pneg %p343
        %p682 = pneg %p340
        %p683 = scmp.lt.s32.totalorder %s30, 3
        %s684 = scalar_select %p683, %s30, 3
        %s685 = scalar_lea.vmem %s13, %s684
        %p686 = pneg %p369
        %p687 = pneg %p366
        %p688 = scmp.lt.s32.totalorder %s30, 3
        %s689 = scalar_select %p688, %s30, 3
        %s690 = scalar_lea.vmem %s14, %s689
        %p691 = pneg %p395
        %p692 = pneg %p392
        %p693 = scmp.lt.s32.totalorder %s30, 3
        %s694 = scalar_select %p693, %s30, 3
        %s695 = scalar_lea.vmem %s15, %s694
        %p696 = pneg %p421
        %p697 = pneg %p418
        %s698 = ssub.s32 3, %s30
        %p699 = scmp.lt.s32.totalorder %s698, 3
        %s700 = scalar_select %p699, %s698, 3
        %s701 = smul.addr %s700, 4
        %s702 = smul.addr %s701, 8
        %s703 = scalar_lea.vmem %s16, %s702
        %p704 = pneg %p449
        %p705 = pneg %p446
        %p706 = pneg %p470
        %p707 = pneg %p467
        %p708 = pneg %p491
        %p709 = pneg %p488
        %p710 = scmp.lt.s32.totalorder %s30, 3
        %s711 = scalar_select %p710, %s30, 3
        %s712 = smul.addr %s711, 4
        %s713 = smul.addr %s712, 8
        %s714 = scalar_lea.vmem %s4, %s713
        %p715 = scmp.lt.s32.totalorder %s30, 3
        %s716 = scalar_select %p715, %s30, 3
        %s717 = scalar_lea.vmem %s5, %s716
        %p718 = scmp.lt.s32.totalorder %s30, 3
        %s719 = scalar_select %p718, %s30, 3
        %s720 = smul.addr %s719, 4
        %s721 = smul.addr %s720, 8
        %s722 = scalar_lea.vmem %s6, %s721
        %p723 = scmp.lt.s32.totalorder %s30, 3
        %s724 = scalar_select %p723, %s30, 3
        %s725 = scalar_lea.vmem %s7, %s724
        %p726 = scmp.lt.s32.totalorder %s30, 3
        %s727 = scalar_select %p726, %s30, 3
        %s728 = scalar_lea.vmem %s8, %s727
        %p729 = scmp.lt.s32.totalorder %s30, 3
        %s730 = scalar_select %p729, %s30, 3
        %s731 = scalar_lea.vmem %s9, %s730
        %p732 = scmp.lt.s32.totalorder %s30, 3
        %s733 = scalar_select %p732, %s30, 3
        %s734 = smul.addr %s733, 4
        %s735 = smul.addr %s734, 8
        %s736 = scalar_lea.vmem %s10, %s735
        %p737 = scmp.lt.s32.totalorder %s30, 3
        %s738 = scalar_select %p737, %s30, 3
        %s739 = scalar_lea.vmem %s11, %s738
        %p740 = scmp.lt.s32.totalorder %s30, 3
        %s741 = scalar_select %p740, %s30, 3
        %s742 = smul.addr %s741, 8
        %s743 = smul.addr %s742, 8
        %s744 = scalar_lea.vmem %s12, %s743
        %p745 = scmp.lt.s32.totalorder %s30, 3
        %s746 = scalar_select %p745, %s30, 3
        %s747 = scalar_lea.vmem %s13, %s746
        %p748 = scmp.lt.s32.totalorder %s30, 3
        %s749 = scalar_select %p748, %s30, 3
        %s750 = scalar_lea.vmem %s14, %s749
        %p751 = scmp.lt.s32.totalorder %s30, 3
        %s752 = scalar_select %p751, %s30, 3
        %s753 = scalar_lea.vmem %s15, %s752
        %s754 = ssub.s32 3, %s30
        %p755 = scmp.lt.s32.totalorder %s754, 3
        %s756 = scalar_select %p755, %s754, 3
        %s757 = smul.addr %s756, 4
        %s758 = smul.addr %s757, 8
        %s759 = scalar_lea.vmem %s16, %s758
        %s760 = ssub.s32 3, %s30
        %p761 = scmp.eq.s32.totalorder %s30, 0
        // Predicated region
        $region93: #{vdet_forward.1} parent=91 // pred_check
          %p762 = pneg %p761
        $region94: #{vdet_forward.1} parent=91 // pred_check_branch
          %764 = sbr.rel (%p762) target = $region96
        $region95: #{vdet_forward.1} parent=91 // pred_region
          %v765 = vld [vmem:[%s0] sm:$0xff]
          %v766 = vld [vmem:[%s0 + $0x8] sm:$0xff]
          %v767 = vld [vmem:[%s2] sm:$0x1]
          %v768 = vld [vmem:[%s3] sm:$0x1]
          %vm769 = vcmask 261120
          %v770 = vsel %vm769, %v765, 0.0
          %771 = vadd.xlane.f32.xlu0 %v770
          %v772 = vpop.xlane.xlu0 %771
          %v773 = vsel %vm769, %v766, 0.0
          %774 = vadd.xlane.f32.xlu0 %v773
          %v775 = vpop.xlane.xlu0 %774
          %v776 = vrcp.pop 32.0
          %v777 = vmul.f32 %v772, %v776
          %v778 = vmul.f32 %v775, %v776
          %v779 = vsub.f32 %v765, %v777
          %v780 = vsub.f32 %v766, %v778
          %v781 = vmul.f32 %v779, %v779
          %v782 = vmul.f32 %v780, %v780
          %v783 = vsel %vm769, %v781, 0.0
          %784 = vadd.xlane.f32.xlu0 %v783
          %v785 = vpop.xlane.xlu0 %784
          %v786 = vsel %vm769, %v782, 0.0
          %787 = vadd.xlane.f32.xlu0 %v786
          %v788 = vpop.xlane.xlu0 %787
          %v789 = vmul.f32 %v785, %v776
          %v790 = vmul.f32 %v788, %v776
          %v791 = vadd.f32 %v789, 1e-12
          %v792 = vadd.f32 %v790, 1e-12
          %v793 = vrsqrt.pop %v791
          %v794 = vrsqrt.pop %v792
          %v795 = vmul.f32 %v779, %v793
          %v796 = vmul.f32 %v780, %v794
          %v798 = vlaneseq
          %v799 = vshrl.u32 %v798, 7
          %v800 = vsub.s32 0, %v799
          %v801 = vrot.slane %v767, %v800
          %v803 = vmul.f32 %v795, %v801
          %v804 = vmul.f32 %v796, %v801
          %v806 = vlaneseq
          %v807 = vshrl.u32 %v806, 7
          %v808 = vsub.s32 0, %v807
          %v809 = vrot.slane %v768, %v808
          %v811 = vadd.f32 %v803, %v809
          %v812 = vadd.f32 %v804, %v809
          %813 = vst.msk [vmem:[#allocation2] sm:$0xff] %vm769, %v811
          %814 = vst.msk [vmem:[#allocation2 + $0x8] sm:$0xff] %vm769, %v812
          %v815 = vld [vmem:[%s17] sm:$0x1]
          %v817 = vlaneseq
          %v818 = vshrl.u32 %v817, 7
          %v819 = vsub.s32 0, %v818
          %v820 = vrot.slane %v815, %v819
          %v822 = vadd.f32 %v820, 0.0
          %823 = vst [vmem:[#allocation3] sm:$0x3] %v822
        $region96: #{vdet_forward.1} parent=91 // pred_fallthru
          _
        %v824 = vld [vmem:[#allocation2] sm:$0xff]
        %v825 = vld [vmem:[#allocation2 + $0x8] sm:$0xff]
        %v826 = vld [vmem:[%s714] sm:$0xff]
        %v827 = vld [vmem:[%s714 + $0x8] sm:$0xff]
        %v828 = vld [vmem:[%s714 + $0x10] sm:$0xff]
        %v829 = vld [vmem:[%s714 + $0x18] sm:$0xff]
        %v830 = vld [vmem:[%s717] sm:$0x1]
        %v832 = vlaneseq
        %v833 = vshrl.u32 %v832, 7
        %v834 = vsub.s32 0, %v833
        %v835 = vrot.slane %v830, %v834
        %vm837 = vcmask 261120
        %v839 = vsel %vm837, %v824, 0
        %v842 = vsel %vm837, %v825, 0
        %844 = vmatprep.subr.mxu0 0.0
        %845 = vmatpush1.msra.mxu0 %v826
        %846 = vmatprep.subr.mxu0 0.0
        %847 = vmatpush1.msra.mxu0 %v827
        %848 = vmatprep.subr.mxu0 0.0
        %849 = vmatpush1.msra.mxu0 %v828
        %850 = vmatprep.subr.mxu0 0.0
        %851 = vmatpush1.msra.mxu0 %v829
        %852 = vmatprep.subr.mxu0 0.0
        %853 = vmatpush1.msra.mxu0 0.0
        %854 = vmatprep.subr.mxu0 0.0
        %855 = vmatpush1.msra.mxu0 0.0
        %856 = vmatprep.subr.mxu0 0.0
        %857 = vmatpush1.msra.mxu0 0.0
        %858 = vmatprep.subr.mxu0 0.0
        %859 = vmatpush1.msra.mxu0 0.0
        %860 = vmatprep.subr.mxu0 0.0
        %861 = vmatpush1.msra.mxu0 0.0
        %862 = vmatprep.subr.mxu0 0.0
        %863 = vmatpush1.msra.mxu0 0.0
        %864 = vmatprep.subr.mxu0 0.0
        %865 = vmatpush1.msra.mxu0 0.0
        %866 = vmatprep.subr.mxu0 0.0
        %867 = vmatpush1.msra.mxu0 0.0
        %868 = vmatprep.subr.mxu0 0.0
        %869 = vmatpush1.msra.mxu0 0.0
        %870 = vmatprep.subr.mxu0 0.0
        %871 = vmatpush1.msra.mxu0 0.0
        %872 = vmatprep.subr.mxu0 0.0
        %873 = vmatpush1.msra.mxu0 0.0
        %874 = vmatprep.subr.mxu0 0.0
        %875 = vmatpush1.msra.mxu0 0.0
        %876 = vmatprep.subr.mxu0 0.0
        %877 = vmatpush1.msra.mxu0 0.0
        %878 = vmatprep.subr.mxu0 0.0
        %879 = vmatpush1.msra.mxu0 0.0
        %880 = vmatprep.subr.mxu0 0.0
        %881 = vmatpush1.msra.mxu0 0.0
        %882 = vmatprep.subr.mxu0 0.0
        %883 = vmatpush1.msra.mxu0 0.0
        %884 = vmatprep.subr.mxu0 0.0
        %885 = vmatpush1.msra.mxu0 0.0
        %886 = vmatprep.subr.mxu0 0.0
        %887 = vmatpush1.msra.mxu0 0.0
        %888 = vmatprep.subr.mxu0 0.0
        %889 = vmatpush1.msra.mxu0 0.0
        %890 = vmatprep.subr.mxu0 0.0
        %891 = vmatpush1.msra.mxu0 0.0
        %892 = vmatprep.subr.mxu0 0.0
        %893 = vmatpush1.msra.mxu0 0.0
        %894 = vmatprep.subr.mxu0 0.0
        %895 = vmatpush1.msra.mxu0 0.0
        %896 = vmatprep.subr.mxu0 0.0
        %897 = vmatpush1.msra.mxu0 0.0
        %898 = vmatprep.subr.mxu0 0.0
        %899 = vmatpush1.msra.mxu0 0.0
        %900 = vmatprep.subr.mxu0 0.0
        %901 = vmatpush1.msra.mxu0 0.0
        %902 = vmatprep.subr.mxu0 0.0
        %903 = vmatpush1.msra.mxu0 0.0
        %904 = vmatprep.subr.mxu0 0.0
        %905 = vmatpush1.msra.mxu0 0.0
        %906 = vmatprep.subr.mxu0 0.0
        %907 = vmatpush1.msra.mxu0 0.0
        %908 = vmatprep.mubr.f32.mxu0 0.0
        %909 = vmatmul.mubr.f32.gmra.mrb[0].mxu0 %v839
        %v910 = vpop.f32.mrb[0].mxu0
        %v911 = vadd.f32 %v835, %v910
        %v912 = vpop.f32.mrb[0].mxu0
        %913 = vmatprep.mubr.f32.mxu0 0.0
        %914 = vmatmul.mubr.f32.gmra.mrb[0].mxu0 %v842
        %v915 = vpop.f32.mrb[0].mxu0
        %v916 = vadd.f32 %v835, %v915
        %v917 = vpop.f32.mrb[0].mxu0
        %918 = vdwg.mxu0
        %v919 = vld [vmem:[%s1] sm:$0x3]
        %v922 = vunpack.c.l.s4 1966171168
        %v923 = vunpack.c.0.s8 %v922
        %v924 = vlaneseq
        %v925 = vshrl.u32 %v924, 7
        %v926 = vsub.s32 %v923, %v925
        %v927 = vrot.slane %v919, %v926
        %v928 = vcombine.high %v927, %v927
        %v930 = vunpack.c.l.s4 1966171168
        %v931 = vunpack.c.0.s8 %v930
        %v932 = vlaneseq
        %v933 = vshrl.u32 %v932, 7
        %v934 = vsub.s32 %v931, %v933
        %v935 = vrot.slane %v927, %v934
        %v937 = vunpack.c.l.s4 1966171168
        %v938 = vunpack.c.0.s8 %v937
        %v939 = vlaneseq
        %v940 = vshrl.u32 %v939, 7
        %v941 = vsub.s32 %v938, %v940
        %v942 = vrot.slane %v928, %v941
        %944 = vrot.lane.b32.xlu0 %v911, 96
        %v945 = vpop.permute.xlu0 %944
        %vm946 = vcmask 130048
        %v947 = vsel %vm946, %v911, 0
        %v949 = vsel %vm946, %v945, 0
        %951 = vmatprep.subr.mxu0 0.0
        %952 = vmatpush1.xpose.msra.mxu0 %v949
        %953 = vmatprep.subr.mxu0 0.0
        %954 = vmatpush1.xpose.msra.mxu0 0.0
        %955 = vmatprep.subr.mxu0 0.0
        %956 = vmatpush1.xpose.msra.mxu0 0.0
        %957 = vmatprep.subr.mxu0 0.0
        %958 = vmatpush1.xpose.msra.mxu0 0.0
        %959 = vmatprep.subr.mxu0 0.0
        %960 = vmatpush1.xpose.msra.mxu0 0.0
        %961 = vmatprep.subr.mxu0 0.0
        %962 = vmatpush1.xpose.msra.mxu0 0.0
        %963 = vmatprep.subr.mxu0 0.0
        %964 = vmatpush1.xpose.msra.mxu0 0.0
        %965 = vmatprep.subr.mxu0 0.0
        %966 = vmatpush1.xpose.msra.mxu0 0.0
        %967 = vmatprep.subr.mxu0 0.0
        %968 = vmatpush1.xpose.msra.mxu0 0.0
        %969 = vmatprep.subr.mxu0 0.0
        %970 = vmatpush1.xpose.msra.mxu0 0.0
        %971 = vmatprep.subr.mxu0 0.0
        %972 = vmatpush1.xpose.msra.mxu0 0.0
        %973 = vmatprep.subr.mxu0 0.0
        %974 = vmatpush1.xpose.msra.mxu0 0.0
        %975 = vmatprep.subr.mxu0 0.0
        %976 = vmatpush1.xpose.msra.mxu0 0.0
        %977 = vmatprep.subr.mxu0 0.0
        %978 = vmatpush1.xpose.msra.mxu0 0.0
        %979 = vmatprep.subr.mxu0 0.0
        %980 = vmatpush1.xpose.msra.mxu0 0.0
        %981 = vmatprep.subr.mxu0 0.0
        %982 = vmatpush1.xpose.msra.mxu0 0.0
        %983 = vmatprep.subr.mxu0 0.0
        %984 = vmatpush1.xpose.msra.mxu0 0.0
        %985 = vmatprep.subr.mxu0 0.0
        %986 = vmatpush1.xpose.msra.mxu0 0.0
        %987 = vmatprep.subr.mxu0 0.0
        %988 = vmatpush1.xpose.msra.mxu0 0.0
        %989 = vmatprep.subr.mxu0 0.0
        %990 = vmatpush1.xpose.msra.mxu0 0.0
        %991 = vmatprep.subr.mxu0 0.0
        %992 = vmatpush1.xpose.msra.mxu0 0.0
        %993 = vmatprep.subr.mxu0 0.0
        %994 = vmatpush1.xpose.msra.mxu0 0.0
        %995 = vmatprep.subr.mxu0 0.0
        %996 = vmatpush1.xpose.msra.mxu0 0.0
        %997 = vmatprep.subr.mxu0 0.0
        %998 = vmatpush1.xpose.msra.mxu0 0.0
        %999 = vmatprep.subr.mxu0 0.0
        %1000 = vmatpush1.xpose.msra.mxu0 0.0
        %1001 = vmatprep.subr.mxu0 0.0
        %1002 = vmatpush1.xpose.msra.mxu0 0.0
        %1003 = vmatprep.subr.mxu0 0.0
        %1004 = vmatpush1.xpose.msra.mxu0 0.0
        %1005 = vmatprep.subr.mxu0 0.0
        %1006 = vmatpush1.xpose.msra.mxu0 0.0
        %1007 = vmatprep.subr.mxu0 0.0
        %1008 = vmatpush1.xpose.msra.mxu0 0.0
        %1009 = vmatprep.subr.mxu0 0.0
        %1010 = vmatpush1.xpose.msra.mxu0 0.0
        %1011 = vmatprep.subr.mxu0 0.0
        %1012 = vmatpush1.xpose.msra.mxu0 0.0
        %1013 = vmatprep.subr.mxu0 0.0
        %1014 = vmatpush1.xpose.msra.mxu0 0.0
        %1015 = vmatprep.mubr.f32.mxu0 0.0
        %1016 = vmatmul.mubr.f32.gmra.mrb[0].mxu0 %v947
        %v1017 = vpop.f32.mrb[0].mxu0
        %v1018 = vadd.f32 0.0, %v1017
        %v1019 = vpop.f32.mrb[0].mxu0
        %1020 = vdwg.mxu0
        %1022 = vrot.lane.b32.xlu0 %v916, 96
        %v1023 = vpop.permute.xlu0 %1022
        %v1024 = vsel %vm946, %v916, 0
        %v1026 = vsel %vm946, %v1023, 0
        %1028 = vmatprep.subr.mxu0 0.0
        %1029 = vmatpush1.xpose.msra.mxu0 %v1026
        %1030 = vmatprep.subr.mxu0 0.0
        %1031 = vmatpush1.xpose.msra.mxu0 0.0
        %1032 = vmatprep.subr.mxu0 0.0
        %1033 = vmatpush1.xpose.msra.mxu0 0.0
        %1034 = vmatprep.subr.mxu0 0.0
        %1035 = vmatpush1.xpose.msra.mxu0 0.0
        %1036 = vmatprep.subr.mxu0 0.0
        %1037 = vmatpush1.xpose.msra.mxu0 0.0
        %1038 = vmatprep.subr.mxu0 0.0
        %1039 = vmatpush1.xpose.msra.mxu0 0.0
        %1040 = vmatprep.subr.mxu0 0.0
        %1041 = vmatpush1.xpose.msra.mxu0 0.0
        %1042 = vmatprep.subr.mxu0 0.0
        %1043 = vmatpush1.xpose.msra.mxu0 0.0
        %1044 = vmatprep.subr.mxu0 0.0
        %1045 = vmatpush1.xpose.msra.mxu0 0.0
        %1046 = vmatprep.subr.mxu0 0.0
        %1047 = vmatpush1.xpose.msra.mxu0 0.0
        %1048 = vmatprep.subr.mxu0 0.0
        %1049 = vmatpush1.xpose.msra.mxu0 0.0
        %1050 = vmatprep.subr.mxu0 0.0
        %1051 = vmatpush1.xpose.msra.mxu0 0.0
        %1052 = vmatprep.subr.mxu0 0.0
        %1053 = vmatpush1.xpose.msra.mxu0 0.0
        %1054 = vmatprep.subr.mxu0 0.0
        %1055 = vmatpush1.xpose.msra.mxu0 0.0
        %1056 = vmatprep.subr.mxu0 0.0
        %1057 = vmatpush1.xpose.msra.mxu0 0.0
        %1058 = vmatprep.subr.mxu0 0.0
        %1059 = vmatpush1.xpose.msra.mxu0 0.0
        %1060 = vmatprep.subr.mxu0 0.0
        %1061 = vmatpush1.xpose.msra.mxu0 0.0
        %1062 = vmatprep.subr.mxu0 0.0
        %1063 = vmatpush1.xpose.msra.mxu0 0.0
        %1064 = vmatprep.subr.mxu0 0.0
        %1065 = vmatpush1.xpose.msra.mxu0 0.0
        %1066 = vmatprep.subr.mxu0 0.0
        %1067 = vmatpush1.xpose.msra.mxu0 0.0
        %1068 = vmatprep.subr.mxu0 0.0
        %1069 = vmatpush1.xpose.msra.mxu0 0.0
        %1070 = vmatprep.subr.mxu0 0.0
        %1071 = vmatpush1.xpose.msra.mxu0 0.0
        %1072 = vmatprep.subr.mxu0 0.0
        %1073 = vmatpush1.xpose.msra.mxu0 0.0
        %1074 = vmatprep.subr.mxu0 0.0
        %1075 = vmatpush1.xpose.msra.mxu0 0.0
        %1076 = vmatprep.subr.mxu0 0.0
        %1077 = vmatpush1.xpose.msra.mxu0 0.0
        %1078 = vmatprep.subr.mxu0 0.0
        %1079 = vmatpush1.xpose.msra.mxu0 0.0
        %1080 = vmatprep.subr.mxu0 0.0
        %1081 = vmatpush1.xpose.msra.mxu0 0.0
        %1082 = vmatprep.subr.mxu0 0.0
        %1083 = vmatpush1.xpose.msra.mxu0 0.0
        %1084 = vmatprep.subr.mxu0 0.0
        %1085 = vmatpush1.xpose.msra.mxu0 0.0
        %1086 = vmatprep.subr.mxu0 0.0
        %1087 = vmatpush1.xpose.msra.mxu0 0.0
        %1088 = vmatprep.subr.mxu0 0.0
        %1089 = vmatpush1.xpose.msra.mxu0 0.0
        %1090 = vmatprep.subr.mxu0 0.0
        %1091 = vmatpush1.xpose.msra.mxu0 0.0
        %1092 = vmatprep.mubr.f32.mxu0 0.0
        %1093 = vmatmul.mubr.f32.gmra.mrb[0].mxu0 %v1024
        %v1094 = vpop.f32.mrb[0].mxu0
        %v1095 = vadd.f32 0.0, %v1094
        %v1096 = vpop.f32.mrb[0].mxu0
        %1097 = vdwg.mxu0
        %v1098 = vmul.f32 %v1018, 0.25
        %v1099 = vmul.f32 %v1095, 0.25
        %v1100 = vlaneseq
        %v1101 = vshrl.u32 %v1100, 7
        %v1102 = vsub.s32 0, %v1101
        %v1103 = vrot.slane %v935, %v1102
        %v1104 = vlaneseq
        %v1105 = vshrl.u32 %v1104, 7
        %v1106 = vsub.s32 0, %v1105
        %v1107 = vrot.slane %v942, %v1106
        %v1110 = vadd.f32 %v1098, %v1103
        %v1111 = vadd.f32 %v1099, %v1107
        %vm1112 = vcmask 64512
        %v1113 = vsel %vm1112, %v1110, -inf
        %1114 = vmax.xlane.f32.xlu0 %v1113
        %v1115 = vpop.xlane.xlu0 %1114
        %v1116 = vsel %vm1112, %v1111, -inf
        %1117 = vmax.xlane.f32.xlu0 %v1116
        %v1118 = vpop.xlane.xlu0 %1117
        %v1119 = vsub.f32 %v1110, %v1115
        %v1120 = vsub.f32 %v1111, %v1118
        %v1121 = vmul.f32 %v1119, 1.442695
        %v1122 = vpow.pop %v1121
        %v1123 = vmul.f32 %v1120, 1.442695
        %v1124 = vpow.pop %v1123
        %v1125 = vsel %vm1112, %v1122, 0.0
        %1126 = vadd.xlane.f32.xlu0 %v1125
        %v1127 = vpop.xlane.xlu0 %1126
        %v1128 = vsel %vm1112, %v1124, 0.0
        %1129 = vadd.xlane.f32.xlu0 %v1128
        %v1130 = vpop.xlane.xlu0 %1129
        %v1131 = vrcp.pop %v1127
        %v1132 = vrcp.pop %v1130
        %v1133 = vmul.f32 %v1122, %v1131
        %v1134 = vmul.f32 %v1124, %v1132
        %1135 = vrot.lane.b32.xlu0 %v911, 64
        %v1136 = vpop.permute.xlu0 %1135
        %v1139 = vsel %vm1112, %v1133, 0
        %1141 = vmatprep.subr.mxu0 0.0
        %1142 = vmatpush1.msra.mxu0 %v1136
        %1143 = vmatprep.subr.mxu0 0.0
        %1144 = vmatpush1.msra.mxu0 0.0
        %1145 = vmatprep.subr.mxu0 0.0
        %1146 = vmatpush1.msra.mxu0 0.0
        %1147 = vmatprep.subr.mxu0 0.0
        %1148 = vmatpush1.msra.mxu0 0.0
        %1149 = vmatprep.subr.mxu0 0.0
        %1150 = vmatpush1.msra.mxu0 0.0
        %1151 = vmatprep.subr.mxu0 0.0
        %1152 = vmatpush1.msra.mxu0 0.0
        %1153 = vmatprep.subr.mxu0 0.0
        %1154 = vmatpush1.msra.mxu0 0.0
        %1155 = vmatprep.subr.mxu0 0.0
        %1156 = vmatpush1.msra.mxu0 0.0
        %1157 = vmatprep.subr.mxu0 0.0
        %1158 = vmatpush1.msra.mxu0 0.0
        %1159 = vmatprep.subr.mxu0 0.0
        %1160 = vmatpush1.msra.mxu0 0.0
        %1161 = vmatprep.subr.mxu0 0.0
        %1162 = vmatpush1.msra.mxu0 0.0
        %1163 = vmatprep.subr.mxu0 0.0
        %1164 = vmatpush1.msra.mxu0 0.0
        %1165 = vmatprep.subr.mxu0 0.0
        %1166 = vmatpush1.msra.mxu0 0.0
        %1167 = vmatprep.subr.mxu0 0.0
        %1168 = vmatpush1.msra.mxu0 0.0
        %1169 = vmatprep.subr.mxu0 0.0
        %1170 = vmatpush1.msra.mxu0 0.0
        %1171 = vmatprep.subr.mxu0 0.0
        %1172 = vmatpush1.msra.mxu0 0.0
        %1173 = vmatprep.subr.mxu0 0.0
        %1174 = vmatpush1.msra.mxu0 0.0
        %1175 = vmatprep.subr.mxu0 0.0
        %1176 = vmatpush1.msra.mxu0 0.0
        %1177 = vmatprep.subr.mxu0 0.0
        %1178 = vmatpush1.msra.mxu0 0.0
        %1179 = vmatprep.subr.mxu0 0.0
        %1180 = vmatpush1.msra.mxu0 0.0
        %1181 = vmatprep.subr.mxu0 0.0
        %1182 = vmatpush1.msra.mxu0 0.0
        %1183 = vmatprep.subr.mxu0 0.0
        %1184 = vmatpush1.msra.mxu0 0.0
        %1185 = vmatprep.subr.mxu0 0.0
        %1186 = vmatpush1.msra.mxu0 0.0
        %1187 = vmatprep.subr.mxu0 0.0
        %1188 = vmatpush1.msra.mxu0 0.0
        %1189 = vmatprep.subr.mxu0 0.0
        %1190 = vmatpush1.msra.mxu0 0.0
        %1191 = vmatprep.subr.mxu0 0.0
        %1192 = vmatpush1.msra.mxu0 0.0
        %1193 = vmatprep.subr.mxu0 0.0
        %1194 = vmatpush1.msra.mxu0 0.0
        %1195 = vmatprep.subr.mxu0 0.0
        %1196 = vmatpush1.msra.mxu0 0.0
        %1197 = vmatprep.subr.mxu0 0.0
        %1198 = vmatpush1.msra.mxu0 0.0
        %1199 = vmatprep.subr.mxu0 0.0
        %1200 = vmatpush1.msra.mxu0 0.0
        %1201 = vmatprep.subr.mxu0 0.0
        %1202 = vmatpush1.msra.mxu0 0.0
        %1203 = vmatprep.subr.mxu0 0.0
        %1204 = vmatpush1.msra.mxu0 0.0
        %1205 = vmatprep.mubr.f32.mxu0 0.0
        %1206 = vmatmul.mubr.f32.gmra.mrb[0].mxu0 %v1139
        %v1207 = vpop.f32.mrb[0].mxu0
        %v1208 = vadd.f32 0.0, %v1207
        %v1209 = vpop.f32.mrb[0].mxu0
        %1210 = vdwg.mxu0
        %1211 = vrot.lane.b32.xlu0 %v916, 64
        %v1212 = vpop.permute.xlu0 %1211
        %v1215 = vsel %vm1112, %v1134, 0
        %1217 = vmatprep.subr.mxu0 0.0
        %1218 = vmatpush1.msra.mxu0 %v1212
        %1219 = vmatprep.subr.mxu0 0.0
        %1220 = vmatpush1.msra.mxu0 0.0
        %1221 = vmatprep.subr.mxu0 0.0
        %1222 = vmatpush1.msra.mxu0 0.0
        %1223 = vmatprep.subr.mxu0 0.0
        %1224 = vmatpush1.msra.mxu0 0.0
        %1225 = vmatprep.subr.mxu0 0.0
        %1226 = vmatpush1.msra.mxu0 0.0
        %1227 = vmatprep.subr.mxu0 0.0
        %1228 = vmatpush1.msra.mxu0 0.0
        %1229 = vmatprep.subr.mxu0 0.0
        %1230 = vmatpush1.msra.mxu0 0.0
        %1231 = vmatprep.subr.mxu0 0.0
        %1232 = vmatpush1.msra.mxu0 0.0
        %1233 = vmatprep.subr.mxu0 0.0
        %1234 = vmatpush1.msra.mxu0 0.0
        %1235 = vmatprep.subr.mxu0 0.0
        %1236 = vmatpush1.msra.mxu0 0.0
        %1237 = vmatprep.subr.mxu0 0.0
        %1238 = vmatpush1.msra.mxu0 0.0
        %1239 = vmatprep.subr.mxu0 0.0
        %1240 = vmatpush1.msra.mxu0 0.0
        %1241 = vmatprep.subr.mxu0 0.0
        %1242 = vmatpush1.msra.mxu0 0.0
        %1243 = vmatprep.subr.mxu0 0.0
        %1244 = vmatpush1.msra.mxu0 0.0
        %1245 = vmatprep.subr.mxu0 0.0
        %1246 = vmatpush1.msra.mxu0 0.0
        %1247 = vmatprep.subr.mxu0 0.0
        %1248 = vmatpush1.msra.mxu0 0.0
        %1249 = vmatprep.subr.mxu0 0.0
        %1250 = vmatpush1.msra.mxu0 0.0
        %1251 = vmatprep.subr.mxu0 0.0
        %1252 = vmatpush1.msra.mxu0 0.0
        %1253 = vmatprep.subr.mxu0 0.0
        %1254 = vmatpush1.msra.mxu0 0.0
        %1255 = vmatprep.subr.mxu0 0.0
        %1256 = vmatpush1.msra.mxu0 0.0
        %1257 = vmatprep.subr.mxu0 0.0
        %1258 = vmatpush1.msra.mxu0 0.0
        %1259 = vmatprep.subr.mxu0 0.0
        %1260 = vmatpush1.msra.mxu0 0.0
        %1261 = vmatprep.subr.mxu0 0.0
        %1262 = vmatpush1.msra.mxu0 0.0
        %1263 = vmatprep.subr.mxu0 0.0
        %1264 = vmatpush1.msra.mxu0 0.0
        %1265 = vmatprep.subr.mxu0 0.0
        %1266 = vmatpush1.msra.mxu0 0.0
        %1267 = vmatprep.subr.mxu0 0.0
        %1268 = vmatpush1.msra.mxu0 0.0
        %1269 = vmatprep.subr.mxu0 0.0
        %1270 = vmatpush1.msra.mxu0 0.0
        %1271 = vmatprep.subr.mxu0 0.0
        %1272 = vmatpush1.msra.mxu0 0.0
        %1273 = vmatprep.subr.mxu0 0.0
        %1274 = vmatpush1.msra.mxu0 0.0
        %1275 = vmatprep.subr.mxu0 0.0
        %1276 = vmatpush1.msra.mxu0 0.0
        %1277 = vmatprep.subr.mxu0 0.0
        %1278 = vmatpush1.msra.mxu0 0.0
        %1279 = vmatprep.subr.mxu0 0.0
        %1280 = vmatpush1.msra.mxu0 0.0
        %1281 = vmatprep.mubr.f32.mxu0 0.0
        %1282 = vmatmul.mubr.f32.gmra.mrb[0].mxu0 %v1215
        %v1283 = vpop.f32.mrb[0].mxu0
        %v1284 = vadd.f32 0.0, %v1283
        %v1285 = vpop.f32.mrb[0].mxu0
        %1286 = vdwg.mxu0
        %1287 = vrot.lane.b32.xlu0 %v911, 112
        %v1288 = vpop.permute.xlu0 %1287
        %1289 = vrot.lane.b32.xlu0 %v911, 80
        %v1290 = vpop.permute.xlu0 %1289
        %v1291 = vsel %vm946, %v1288, 0
        %v1293 = vsel %vm946, %v1290, 0
        %1295 = vmatprep.subr.mxu0 0.0
        %1296 = vmatpush1.xpose.msra.mxu0 %v1293
        %1297 = vmatprep.subr.mxu0 0.0
        %1298 = vmatpush1.xpose.msra.mxu0 0.0
        %1299 = vmatprep.subr.mxu0 0.0
        %1300 = vmatpush1.xpose.msra.mxu0 0.0
        %1301 = vmatprep.subr.mxu0 0.0
        %1302 = vmatpush1.xpose.msra.mxu0 0.0
        %1303 = vmatprep.subr.mxu0 0.0
        %1304 = vmatpush1.xpose.msra.mxu0 0.0
        %1305 = vmatprep.subr.mxu0 0.0
        %1306 = vmatpush1.xpose.msra.mxu0 0.0
        %1307 = vmatprep.subr.mxu0 0.0
        %1308 = vmatpush1.xpose.msra.mxu0 0.0
        %1309 = vmatprep.subr.mxu0 0.0
        %1310 = vmatpush1.xpose.msra.mxu0 0.0
        %1311 = vmatprep.subr.mxu0 0.0
        %1312 = vmatpush1.xpose.msra.mxu0 0.0
        %1313 = vmatprep.subr.mxu0 0.0
        %1314 = vmatpush1.xpose.msra.mxu0 0.0
        %1315 = vmatprep.subr.mxu0 0.0
        %1316 = vmatpush1.xpose.msra.mxu0 0.0
        %1317 = vmatprep.subr.mxu0 0.0
        %1318 = vmatpush1.xpose.msra.mxu0 0.0
        %1319 = vmatprep.subr.mxu0 0.0
        %1320 = vmatpush1.xpose.msra.mxu0 0.0
        %1321 = vmatprep.subr.mxu0 0.0
        %1322 = vmatpush1.xpose.msra.mxu0 0.0
        %1323 = vmatprep.subr.mxu0 0.0
        %1324 = vmatpush1.xpose.msra.mxu0 0.0
        %1325 = vmatprep.subr.mxu0 0.0
        %1326 = vmatpush1.xpose.msra.mxu0 0.0
        %1327 = vmatprep.subr.mxu0 0.0
        %1328 = vmatpush1.xpose.msra.mxu0 0.0
        %1329 = vmatprep.subr.mxu0 0.0
        %1330 = vmatpush1.xpose.msra.mxu0 0.0
        %1331 = vmatprep.subr.mxu0 0.0
        %1332 = vmatpush1.xpose.msra.mxu0 0.0
        %1333 = vmatprep.subr.mxu0 0.0
        %1334 = vmatpush1.xpose.msra.mxu0 0.0
        %1335 = vmatprep.subr.mxu0 0.0
        %1336 = vmatpush1.xpose.msra.mxu0 0.0
        %1337 = vmatprep.subr.mxu0 0.0
        %1338 = vmatpush1.xpose.msra.mxu0 0.0
        %1339 = vmatprep.subr.mxu0 0.0
        %1340 = vmatpush1.xpose.msra.mxu0 0.0
        %1341 = vmatprep.subr.mxu0 0.0
        %1342 = vmatpush1.xpose.msra.mxu0 0.0
        %1343 = vmatprep.subr.mxu0 0.0
        %1344 = vmatpush1.xpose.msra.mxu0 0.0
        %1345 = vmatprep.subr.mxu0 0.0
        %1346 = vmatpush1.xpose.msra.mxu0 0.0
        %1347 = vmatprep.subr.mxu0 0.0
        %1348 = vmatpush1.xpose.msra.mxu0 0.0
        %1349 = vmatprep.subr.mxu0 0.0
        %1350 = vmatpush1.xpose.msra.mxu0 0.0
        %1351 = vmatprep.subr.mxu0 0.0
        %1352 = vmatpush1.xpose.msra.mxu0 0.0
        %1353 = vmatprep.subr.mxu0 0.0
        %1354 = vmatpush1.xpose.msra.mxu0 0.0
        %1355 = vmatprep.subr.mxu0 0.0
        %1356 = vmatpush1.xpose.msra.mxu0 0.0
        %1357 = vmatprep.subr.mxu0 0.0
        %1358 = vmatpush1.xpose.msra.mxu0 0.0
        %1359 = vmatprep.mubr.f32.mxu0 0.0
        %1360 = vmatmul.mubr.f32.gmra.mrb[0].mxu0 %v1291
        %v1361 = vpop.f32.mrb[0].mxu0
        %v1362 = vadd.f32 0.0, %v1361
        %v1363 = vpop.f32.mrb[0].mxu0
        %1364 = vdwg.mxu0
        %1365 = vrot.lane.b32.xlu0 %v916, 112
        %v1366 = vpop.permute.xlu0 %1365
        %1367 = vrot.lane.b32.xlu0 %v916, 80
        %v1368 = vpop.permute.xlu0 %1367
        %v1369 = vsel %vm946, %v1366, 0
        %v1371 = vsel %vm946, %v1368, 0
        %1373 = vmatprep.subr.mxu0 0.0
        %1374 = vmatpush1.xpose.msra.mxu0 %v1371
        %1375 = vmatprep.subr.mxu0 0.0
        %1376 = vmatpush1.xpose.msra.mxu0 0.0
        %1377 = vmatprep.subr.mxu0 0.0
        %1378 = vmatpush1.xpose.msra.mxu0 0.0
        %1379 = vmatprep.subr.mxu0 0.0
        %1380 = vmatpush1.xpose.msra.mxu0 0.0
        %1381 = vmatprep.subr.mxu0 0.0
        %1382 = vmatpush1.xpose.msra.mxu0 0.0
        %1383 = vmatprep.subr.mxu0 0.0
        %1384 = vmatpush1.xpose.msra.mxu0 0.0
        %1385 = vmatprep.subr.mxu0 0.0
        %1386 = vmatpush1.xpose.msra.mxu0 0.0
        %1387 = vmatprep.subr.mxu0 0.0
        %1388 = vmatpush1.xpose.msra.mxu0 0.0
        %1389 = vmatprep.subr.mxu0 0.0
        %1390 = vmatpush1.xpose.msra.mxu0 0.0
        %1391 = vmatprep.subr.mxu0 0.0
        %1392 = vmatpush1.xpose.msra.mxu0 0.0
        %1393 = vmatprep.subr.mxu0 0.0
        %1394 = vmatpush1.xpose.msra.mxu0 0.0
        %1395 = vmatprep.subr.mxu0 0.0
        %1396 = vmatpush1.xpose.msra.mxu0 0.0
        %1397 = vmatprep.subr.mxu0 0.0
        %1398 = vmatpush1.xpose.msra.mxu0 0.0
        %1399 = vmatprep.subr.mxu0 0.0
        %1400 = vmatpush1.xpose.msra.mxu0 0.0
        %1401 = vmatprep.subr.mxu0 0.0
        %1402 = vmatpush1.xpose.msra.mxu0 0.0
        %1403 = vmatprep.subr.mxu0 0.0
        %1404 = vmatpush1.xpose.msra.mxu0 0.0
        %1405 = vmatprep.subr.mxu0 0.0
        %1406 = vmatpush1.xpose.msra.mxu0 0.0
        %1407 = vmatprep.subr.mxu0 0.0
        %1408 = vmatpush1.xpose.msra.mxu0 0.0
        %1409 = vmatprep.subr.mxu0 0.0
        %1410 = vmatpush1.xpose.msra.mxu0 0.0
        %1411 = vmatprep.subr.mxu0 0.0
        %1412 = vmatpush1.xpose.msra.mxu0 0.0
        %1413 = vmatprep.subr.mxu0 0.0
        %1414 = vmatpush1.xpose.msra.mxu0 0.0
        %1415 = vmatprep.subr.mxu0 0.0
        %1416 = vmatpush1.xpose.msra.mxu0 0.0
        %1417 = vmatprep.subr.mxu0 0.0
        %1418 = vmatpush1.xpose.msra.mxu0 0.0
        %1419 = vmatprep.subr.mxu0 0.0
        %1420 = vmatpush1.xpose.msra.mxu0 0.0
        %1421 = vmatprep.subr.mxu0 0.0
        %1422 = vmatpush1.xpose.msra.mxu0 0.0
        %1423 = vmatprep.subr.mxu0 0.0
        %1424 = vmatpush1.xpose.msra.mxu0 0.0
        %1425 = vmatprep.subr.mxu0 0.0
        %1426 = vmatpush1.xpose.msra.mxu0 0.0
        %1427 = vmatprep.subr.mxu0 0.0
        %1428 = vmatpush1.xpose.msra.mxu0 0.0
        %1429 = vmatprep.subr.mxu0 0.0
        %1430 = vmatpush1.xpose.msra.mxu0 0.0
        %1431 = vmatprep.subr.mxu0 0.0
        %1432 = vmatpush1.xpose.msra.mxu0 0.0
        %1433 = vmatprep.subr.mxu0 0.0
        %1434 = vmatpush1.xpose.msra.mxu0 0.0
        %1435 = vmatprep.subr.mxu0 0.0
        %1436 = vmatpush1.xpose.msra.mxu0 0.0
        %1437 = vmatprep.mubr.f32.mxu0 0.0
        %1438 = vmatmul.mubr.f32.gmra.mrb[0].mxu0 %v1369
        %v1439 = vpop.f32.mrb[0].mxu0
        %v1440 = vadd.f32 0.0, %v1439
        %v1441 = vpop.f32.mrb[0].mxu0
        %1442 = vdwg.mxu0
        %v1443 = vmul.f32 %v1362, 0.25
        %v1444 = vmul.f32 %v1440, 0.25
        %v1445 = vadd.f32 %v1443, %v1103
        %v1446 = vadd.f32 %v1444, %v1107
        %v1447 = vsel %vm1112, %v1445, -inf
        %1448 = vmax.xlane.f32.xlu0 %v1447
        %v1449 = vpop.xlane.xlu0 %1448
        %v1450 = vsel %vm1112, %v1446, -inf
        %1451 = vmax.xlane.f32.xlu0 %v1450
        %v1452 = vpop.xlane.xlu0 %1451
        %v1453 = vsub.f32 %v1445, %v1449
        %v1454 = vsub.f32 %v1446, %v1452
        %v1455 = vmul.f32 %v1453, 1.442695
        %v1456 = vpow.pop %v1455
        %v1457 = vmul.f32 %v1454, 1.442695
        %v1458 = vpow.pop %v1457
        %v1459 = vsel %vm1112, %v1456, 0.0
        %1460 = vadd.xlane.f32.xlu0 %v1459
        %v1461 = vpop.xlane.xlu0 %1460
        %v1462 = vsel %vm1112, %v1458, 0.0
        %1463 = vadd.xlane.f32.xlu0 %v1462
        %v1464 = vpop.xlane.xlu0 %1463
        %v1465 = vrcp.pop %v1461
        %v1466 = vrcp.pop %v1464
        %v1467 = vmul.f32 %v1456, %v1465
        %v1468 = vmul.f32 %v1458, %v1466
        %1469 = vrot.lane.b32.xlu0 %v911, 48
        %v1470 = vpop.permute.xlu0 %1469
        %v1473 = vsel %vm1112, %v1467, 0
        %1475 = vmatprep.subr.mxu0 0.0
        %1476 = vmatpush1.msra.mxu0 %v1470
        %1477 = vmatprep.subr.mxu0 0.0
        %1478 = vmatpush1.msra.mxu0 0.0
        %1479 = vmatprep.subr.mxu0 0.0
        %1480 = vmatpush1.msra.mxu0 0.0
        %1481 = vmatprep.subr.mxu0 0.0
        %1482 = vmatpush1.msra.mxu0 0.0
        %1483 = vmatprep.subr.mxu0 0.0
        %1484 = vmatpush1.msra.mxu0 0.0
        %1485 = vmatprep.subr.mxu0 0.0
        %1486 = vmatpush1.msra.mxu0 0.0
        %1487 = vmatprep.subr.mxu0 0.0
        %1488 = vmatpush1.msra.mxu0 0.0
        %1489 = vmatprep.subr.mxu0 0.0
        %1490 = vmatpush1.msra.mxu0 0.0
        %1491 = vmatprep.subr.mxu0 0.0
        %1492 = vmatpush1.msra.mxu0 0.0
        %1493 = vmatprep.subr.mxu0 0.0
        %1494 = vmatpush1.msra.mxu0 0.0
        %1495 = vmatprep.subr.mxu0 0.0
        %1496 = vmatpush1.msra.mxu0 0.0
        %1497 = vmatprep.subr.mxu0 0.0
        %1498 = vmatpush1.msra.mxu0 0.0
        %1499 = vmatprep.subr.mxu0 0.0
        %1500 = vmatpush1.msra.mxu0 0.0
        %1501 = vmatprep.subr.mxu0 0.0
        %1502 = vmatpush1.msra.mxu0 0.0
        %1503 = vmatprep.subr.mxu0 0.0
        %1504 = vmatpush1.msra.mxu0 0.0
        %1505 = vmatprep.subr.mxu0 0.0
        %1506 = vmatpush1.msra.mxu0 0.0
        %1507 = vmatprep.subr.mxu0 0.0
        %1508 = vmatpush1.msra.mxu0 0.0
        %1509 = vmatprep.subr.mxu0 0.0
        %1510 = vmatpush1.msra.mxu0 0.0
        %1511 = vmatprep.subr.mxu0 0.0
        %1512 = vmatpush1.msra.mxu0 0.0
        %1513 = vmatprep.subr.mxu0 0.0
        %1514 = vmatpush1.msra.mxu0 0.0
        %1515 = vmatprep.subr.mxu0 0.0
        %1516 = vmatpush1.msra.mxu0 0.0
        %1517 = vmatprep.subr.mxu0 0.0
        %1518 = vmatpush1.msra.mxu0 0.0
        %1519 = vmatprep.subr.mxu0 0.0
        %1520 = vmatpush1.msra.mxu0 0.0
        %1521 = vmatprep.subr.mxu0 0.0
        %1522 = vmatpush1.msra.mxu0 0.0
        %1523 = vmatprep.subr.mxu0 0.0
        %1524 = vmatpush1.msra.mxu0 0.0
        %1525 = vmatprep.subr.mxu0 0.0
        %1526 = vmatpush1.msra.mxu0 0.0
        %1527 = vmatprep.subr.mxu0 0.0
        %1528 = vmatpush1.msra.mxu0 0.0
        %1529 = vmatprep.subr.mxu0 0.0
        %1530 = vmatpush1.msra.mxu0 0.0
        %1531 = vmatprep.subr.mxu0 0.0
        %1532 = vmatpush1.msra.mxu0 0.0
        %1533 = vmatprep.subr.mxu0 0.0
        %1534 = vmatpush1.msra.mxu0 0.0
        %1535 = vmatprep.subr.mxu0 0.0
        %1536 = vmatpush1.msra.mxu0 0.0
        %1537 = vmatprep.subr.mxu0 0.0
        %1538 = vmatpush1.msra.mxu0 0.0
        %1539 = vmatprep.mubr.f32.mxu0 0.0
        %1540 = vmatmul.mubr.f32.gmra.mrb[0].mxu0 %v1473
        %v1541 = vpop.f32.mrb[0].mxu0
        %v1542 = vadd.f32 0.0, %v1541
        %v1543 = vpop.f32.mrb[0].mxu0
        %1544 = vdwg.mxu0
        %1545 = vrot.lane.b32.xlu0 %v916, 48
        %v1546 = vpop.permute.xlu0 %1545
        %v1549 = vsel %vm1112, %v1468, 0
        %1551 = vmatprep.subr.mxu0 0.0
        %1552 = vmatpush1.msra.mxu0 %v1546
        %1553 = vmatprep.subr.mxu0 0.0
        %1554 = vmatpush1.msra.mxu0 0.0
        %1555 = vmatprep.subr.mxu0 0.0
        %1556 = vmatpush1.msra.mxu0 0.0
        %1557 = vmatprep.subr.mxu0 0.0
        %1558 = vmatpush1.msra.mxu0 0.0
        %1559 = vmatprep.subr.mxu0 0.0
        %1560 = vmatpush1.msra.mxu0 0.0
        %1561 = vmatprep.subr.mxu0 0.0
        %1562 = vmatpush1.msra.mxu0 0.0
        %1563 = vmatprep.subr.mxu0 0.0
        %1564 = vmatpush1.msra.mxu0 0.0
        %1565 = vmatprep.subr.mxu0 0.0
        %1566 = vmatpush1.msra.mxu0 0.0
        %1567 = vmatprep.subr.mxu0 0.0
        %1568 = vmatpush1.msra.mxu0 0.0
        %1569 = vmatprep.subr.mxu0 0.0
        %1570 = vmatpush1.msra.mxu0 0.0
        %1571 = vmatprep.subr.mxu0 0.0
        %1572 = vmatpush1.msra.mxu0 0.0
        %1573 = vmatprep.subr.mxu0 0.0
        %1574 = vmatpush1.msra.mxu0 0.0
        %1575 = vmatprep.subr.mxu0 0.0
        %1576 = vmatpush1.msra.mxu0 0.0
        %1577 = vmatprep.subr.mxu0 0.0
        %1578 = vmatpush1.msra.mxu0 0.0
        %1579 = vmatprep.subr.mxu0 0.0
        %1580 = vmatpush1.msra.mxu0 0.0
        %1581 = vmatprep.subr.mxu0 0.0
        %1582 = vmatpush1.msra.mxu0 0.0
        %1583 = vmatprep.subr.mxu0 0.0
        %1584 = vmatpush1.msra.mxu0 0.0
        %1585 = vmatprep.subr.mxu0 0.0
        %1586 = vmatpush1.msra.mxu0 0.0
        %1587 = vmatprep.subr.mxu0 0.0
        %1588 = vmatpush1.msra.mxu0 0.0
        %1589 = vmatprep.subr.mxu0 0.0
        %1590 = vmatpush1.msra.mxu0 0.0
        %1591 = vmatprep.subr.mxu0 0.0
        %1592 = vmatpush1.msra.mxu0 0.0
        %1593 = vmatprep.subr.mxu0 0.0
        %1594 = vmatpush1.msra.mxu0 0.0
        %1595 = vmatprep.subr.mxu0 0.0
        %1596 = vmatpush1.msra.mxu0 0.0
        %1597 = vmatprep.subr.mxu0 0.0
        %1598 = vmatpush1.msra.mxu0 0.0
        %1599 = vmatprep.subr.mxu0 0.0
        %1600 = vmatpush1.msra.mxu0 0.0
        %1601 = vmatprep.subr.mxu0 0.0
        %1602 = vmatpush1.msra.mxu0 0.0
        %1603 = vmatprep.subr.mxu0 0.0
        %1604 = vmatpush1.msra.mxu0 0.0
        %1605 = vmatprep.subr.mxu0 0.0
        %1606 = vmatpush1.msra.mxu0 0.0
        %1607 = vmatprep.subr.mxu0 0.0
        %1608 = vmatpush1.msra.mxu0 0.0
        %1609 = vmatprep.subr.mxu0 0.0
        %1610 = vmatpush1.msra.mxu0 0.0
        %1611 = vmatprep.subr.mxu0 0.0
        %1612 = vmatpush1.msra.mxu0 0.0
        %1613 = vmatprep.subr.mxu0 0.0
        %1614 = vmatpush1.msra.mxu0 0.0
        %1615 = vmatprep.mubr.f32.mxu0 0.0
        %1616 = vmatmul.mubr.f32.gmra.mrb[0].mxu0 %v1549
        %v1617 = vpop.f32.mrb[0].mxu0
        %v1618 = vadd.f32 0.0, %v1617
        %v1619 = vpop.f32.mrb[0].mxu0
        %1620 = vdwg.mxu0
        %1623 = vrot.lane.b32.xlu0 %v1542, 16
        %v1624 = vpop.permute.xlu0 %1623
        %1625 = vrot.lane.b32.xlu0 %v1618, 16
        %v1626 = vpop.permute.xlu0 %1625
        %v1629 = vsel %vm946, %v1208, %v1624
        %v1630 = vsel %vm946, %v1284, %v1626
        %v1631 = vld [vmem:[%s722] sm:$0xff]
        %v1632 = vld [vmem:[%s722 + $0x8] sm:$0xff]
        %v1633 = vld [vmem:[%s722 + $0x10] sm:$0xff]
        %v1634 = vld [vmem:[%s722 + $0x18] sm:$0xff]
        %v1635 = vld [vmem:[%s725] sm:$0x1]
        %v1637 = vlaneseq
        %v1638 = vshrl.u32 %v1637, 7
        %v1639 = vsub.s32 0, %v1638
        %v1640 = vrot.slane %v1635, %v1639
        %v1643 = vsel %vm837, %v1629, 0
        %v1646 = vsel %vm837, %v1630, 0
        %1648 = vmatprep.subr.mxu0 0.0
        %1649 = vmatpush1.msra.mxu0 %v1631
        %1650 = vmatprep.subr.mxu0 0.0
        %1651 = vmatpush1.msra.mxu0 %v1632
        %1652 = vmatprep.subr.mxu0 0.0
        %1653 = vmatpush1.msra.mxu0 %v1633
        %1654 = vmatprep.subr.mxu0 0.0
        %1655 = vmatpush1.msra.mxu0 %v1634
        %1656 = vmatprep.subr.mxu0 0.0
        %1657 = vmatpush1.msra.mxu0 0.0
        %1658 = vmatprep.subr.mxu0 0.0
        %1659 = vmatpush1.msra.mxu0 0.0
        %1660 = vmatprep.subr.mxu0 0.0
        %1661 = vmatpush1.msra.mxu0 0.0
        %1662 = vmatprep.subr.mxu0 0.0
        %1663 = vmatpush1.msra.mxu0 0.0
        %1664 = vmatprep.subr.mxu0 0.0
        %1665 = vmatpush1.msra.mxu0 0.0
        %1666 = vmatprep.subr.mxu0 0.0
        %1667 = vmatpush1.msra.mxu0 0.0
        %1668 = vmatprep.subr.mxu0 0.0
        %1669 = vmatpush1.msra.mxu0 0.0
        %1670 = vmatprep.subr.mxu0 0.0
        %1671 = vmatpush1.msra.mxu0 0.0
        %1672 = vmatprep.subr.mxu0 0.0
        %1673 = vmatpush1.msra.mxu0 0.0
        %1674 = vmatprep.subr.mxu0 0.0
        %1675 = vmatpush1.msra.mxu0 0.0
        %1676 = vmatprep.subr.mxu0 0.0
        %1677 = vmatpush1.msra.mxu0 0.0
        %1678 = vmatprep.subr.mxu0 0.0
        %1679 = vmatpush1.msra.mxu0 0.0
        %1680 = vmatprep.subr.mxu0 0.0
        %1681 = vmatpush1.msra.mxu0 0.0
        %1682 = vmatprep.subr.mxu0 0.0
        %1683 = vmatpush1.msra.mxu0 0.0
        %1684 = vmatprep.subr.mxu0 0.0
        %1685 = vmatpush1.msra.mxu0 0.0
        %1686 = vmatprep.subr.mxu0 0.0
        %1687 = vmatpush1.msra.mxu0 0.0
        %1688 = vmatprep.subr.mxu0 0.0
        %1689 = vmatpush1.msra.mxu0 0.0
        %1690 = vmatprep.subr.mxu0 0.0
        %1691 = vmatpush1.msra.mxu0 0.0
        %1692 = vmatprep.subr.mxu0 0.0
        %1693 = vmatpush1.msra.mxu0 0.0
        %1694 = vmatprep.subr.mxu0 0.0
        %1695 = vmatpush1.msra.mxu0 0.0
        %1696 = vmatprep.subr.mxu0 0.0
        %1697 = vmatpush1.msra.mxu0 0.0
        %1698 = vmatprep.subr.mxu0 0.0
        %1699 = vmatpush1.msra.mxu0 0.0
        %1700 = vmatprep.subr.mxu0 0.0
        %1701 = vmatpush1.msra.mxu0 0.0
        %1702 = vmatprep.subr.mxu0 0.0
        %1703 = vmatpush1.msra.mxu0 0.0
        %1704 = vmatprep.subr.mxu0 0.0
        %1705 = vmatpush1.msra.mxu0 0.0
        %1706 = vmatprep.subr.mxu0 0.0
        %1707 = vmatpush1.msra.mxu0 0.0
        %1708 = vmatprep.subr.mxu0 0.0
        %1709 = vmatpush1.msra.mxu0 0.0
        %1710 = vmatprep.subr.mxu0 0.0
        %1711 = vmatpush1.msra.mxu0 0.0
        %1712 = vmatprep.mubr.f32.mxu0 0.0
        %1713 = vmatmul.mubr.f32.gmra.mrb[0].mxu0 %v1643
        %v1714 = vpop.f32.mrb[0].mxu0
        %v1715 = vadd.f32 %v1640, %v1714
        %v1716 = vpop.f32.mrb[0].mxu0
        %1717 = vmatprep.mubr.f32.mxu0 0.0
        %1718 = vmatmul.mubr.f32.gmra.mrb[0].mxu0 %v1646
        %v1719 = vpop.f32.mrb[0].mxu0
        %v1720 = vadd.f32 %v1640, %v1719
        %v1721 = vpop.f32.mrb[0].mxu0
        %1722 = vdwg.mxu0
        %v1723 = vadd.f32 %v824, %v1715
        %v1724 = vadd.f32 %v825, %v1720
        %v1725 = vld [vmem:[%s728] sm:$0x1]
        %v1726 = vld [vmem:[%s731] sm:$0x1]
        %v1727 = vsel %vm837, %v1723, 0.0
        %1728 = vadd.xlane.f32.xlu0 %v1727
        %v1729 = vpop.xlane.xlu0 %1728
        %v1730 = vsel %vm837, %v1724, 0.0
        %1731 = vadd.xlane.f32.xlu0 %v1730
        %v1732 = vpop.xlane.xlu0 %1731
        %v1733 = vrcp.pop 32.0
        %v1734 = vmul.f32 %v1729, %v1733
        %v1735 = vmul.f32 %v1732, %v1733
        %v1736 = vsub.f32 %v1723, %v1734
        %v1737 = vsub.f32 %v1724, %v1735
        %v1738 = vmul.f32 %v1736, %v1736
        %v1739 = vmul.f32 %v1737, %v1737
        %v1740 = vsel %vm837, %v1738, 0.0
        %1741 = vadd.xlane.f32.xlu0 %v1740
        %v1742 = vpop.xlane.xlu0 %1741
        %v1743 = vsel %vm837, %v1739, 0.0
        %1744 = vadd.xlane.f32.xlu0 %v1743
        %v1745 = vpop.xlane.xlu0 %1744
        %v1746 = vmul.f32 %v1742, %v1733
        %v1747 = vmul.f32 %v1745, %v1733
        %v1748 = vadd.f32 %v1746, 1e-12
        %v1749 = vadd.f32 %v1747, 1e-12
        %v1750 = vrsqrt.pop %v1748
        %v1751 = vrsqrt.pop %v1749
        %v1752 = vmul.f32 %v1736, %v1750
        %v1753 = vmul.f32 %v1737, %v1751
        %v1755 = vlaneseq
        %v1756 = vshrl.u32 %v1755, 7
        %v1757 = vsub.s32 0, %v1756
        %v1758 = vrot.slane %v1725, %v1757
        %v1760 = vmul.f32 %v1752, %v1758
        %v1761 = vmul.f32 %v1753, %v1758
        %v1763 = vlaneseq
        %v1764 = vshrl.u32 %v1763, 7
        %v1765 = vsub.s32 0, %v1764
        %v1766 = vrot.slane %v1726, %v1765
        %v1768 = vadd.f32 %v1760, %v1766
        %v1769 = vadd.f32 %v1761, %v1766
        %v1770 = vld [vmem:[%s736] sm:$0xff]
        %v1771 = vld [vmem:[%s736 + $0x8] sm:$0xff]
        %v1772 = vld [vmem:[%s736 + $0x10] sm:$0xff]
        %v1773 = vld [vmem:[%s736 + $0x18] sm:$0xff]
        %v1774 = vld [vmem:[%s739] sm:$0x1]
        %v1776 = vlaneseq
        %v1777 = vshrl.u32 %v1776, 7
        %v1778 = vsub.s32 0, %v1777
        %v1779 = vrot.slane %v1774, %v1778
        %v1782 = vsel %vm837, %v1768, 0
        %v1785 = vsel %vm837, %v1769, 0
        %1787 = vmatprep.subr.mxu0 0.0
        %1788 = vmatpush1.msra.mxu0 %v1770
        %1789 = vmatprep.subr.mxu0 0.0
        %1790 = vmatpush1.msra.mxu0 %v1771
        %1791 = vmatprep.subr.mxu0 0.0
        %1792 = vmatpush1.msra.mxu0 %v1772
        %1793 = vmatprep.subr.mxu0 0.0
        %1794 = vmatpush1.msra.mxu0 %v1773
        %1795 = vmatprep.subr.mxu0 0.0
        %1796 = vmatpush1.msra.mxu0 0.0
        %1797 = vmatprep.subr.mxu0 0.0
        %1798 = vmatpush1.msra.mxu0 0.0
        %1799 = vmatprep.subr.mxu0 0.0
        %1800 = vmatpush1.msra.mxu0 0.0
        %1801 = vmatprep.subr.mxu0 0.0
        %1802 = vmatpush1.msra.mxu0 0.0
        %1803 = vmatprep.subr.mxu0 0.0
        %1804 = vmatpush1.msra.mxu0 0.0
        %1805 = vmatprep.subr.mxu0 0.0
        %1806 = vmatpush1.msra.mxu0 0.0
        %1807 = vmatprep.subr.mxu0 0.0
        %1808 = vmatpush1.msra.mxu0 0.0
        %1809 = vmatprep.subr.mxu0 0.0
        %1810 = vmatpush1.msra.mxu0 0.0
        %1811 = vmatprep.subr.mxu0 0.0
        %1812 = vmatpush1.msra.mxu0 0.0
        %1813 = vmatprep.subr.mxu0 0.0
        %1814 = vmatpush1.msra.mxu0 0.0
        %1815 = vmatprep.subr.mxu0 0.0
        %1816 = vmatpush1.msra.mxu0 0.0
        %1817 = vmatprep.subr.mxu0 0.0
        %1818 = vmatpush1.msra.mxu0 0.0
        %1819 = vmatprep.subr.mxu0 0.0
        %1820 = vmatpush1.msra.mxu0 0.0
        %1821 = vmatprep.subr.mxu0 0.0
        %1822 = vmatpush1.msra.mxu0 0.0
        %1823 = vmatprep.subr.mxu0 0.0
        %1824 = vmatpush1.msra.mxu0 0.0
        %1825 = vmatprep.subr.mxu0 0.0
        %1826 = vmatpush1.msra.mxu0 0.0
        %1827 = vmatprep.subr.mxu0 0.0
        %1828 = vmatpush1.msra.mxu0 0.0
        %1829 = vmatprep.subr.mxu0 0.0
        %1830 = vmatpush1.msra.mxu0 0.0
        %1831 = vmatprep.subr.mxu0 0.0
        %1832 = vmatpush1.msra.mxu0 0.0
        %1833 = vmatprep.subr.mxu0 0.0
        %1834 = vmatpush1.msra.mxu0 0.0
        %1835 = vmatprep.subr.mxu0 0.0
        %1836 = vmatpush1.msra.mxu0 0.0
        %1837 = vmatprep.subr.mxu0 0.0
        %1838 = vmatpush1.msra.mxu0 0.0
        %1839 = vmatprep.subr.mxu0 0.0
        %1840 = vmatpush1.msra.mxu0 0.0
        %1841 = vmatprep.subr.mxu0 0.0
        %1842 = vmatpush1.msra.mxu0 0.0
        %1843 = vmatprep.subr.mxu0 0.0
        %1844 = vmatpush1.msra.mxu0 0.0
        %1845 = vmatprep.subr.mxu0 0.0
        %1846 = vmatpush1.msra.mxu0 0.0
        %1847 = vmatprep.subr.mxu0 0.0
        %1848 = vmatpush1.msra.mxu0 0.0
        %1849 = vmatprep.subr.mxu0 0.0
        %1850 = vmatpush1.msra.mxu0 0.0
        %1851 = vmatprep.mubr.f32.mxu0 0.0
        %1852 = vmatmul.mubr.f32.gmra.mrb[0].mxu0 %v1782
        %v1853 = vpop.f32.mrb[0].mxu0
        %v1854 = vadd.f32 %v1779, %v1853
        %v1855 = vpop.f32.mrb[0].mxu0
        %1856 = vmatprep.mubr.f32.mxu0 0.0
        %1857 = vmatmul.mubr.f32.gmra.mrb[0].mxu0 %v1785
        %v1858 = vpop.f32.mrb[0].mxu0
        %v1859 = vadd.f32 %v1779, %v1858
        %v1860 = vpop.f32.mrb[0].mxu0
        %1861 = vdwg.mxu0
        %v1862 = vmul.f32 %v1854, %v1854
        %v1863 = vmul.f32 %v1859, %v1859
        %v1864 = vmul.f32 %v1854, %v1862
        %v1865 = vmul.f32 %v1859, %v1863
        %v1866 = vmul.f32 %v1864, 0.044715
        %v1867 = vmul.f32 %v1865, 0.044715
        %v1868 = vadd.f32 %v1854, %v1866
        %v1869 = vadd.f32 %v1859, %v1867
        %v1870 = vmul.f32 %v1868, 0.7978846
        %v1871 = vmul.f32 %v1869, 0.7978846
        %v1872 = vtanh.pop %v1870
        %v1873 = vtanh.pop %v1871
        %v1874 = vadd.f32 %v1872, 1.0
        %v1875 = vadd.f32 %v1873, 1.0
        %v1876 = vmul.f32 %v1874, 0.5
        %v1877 = vmul.f32 %v1875, 0.5
        %v1878 = vmul.f32 %v1854, %v1876
        %v1879 = vmul.f32 %v1859, %v1877
        %v1880 = vld [vmem:[%s744] sm:$0xff]
        %v1881 = vld [vmem:[%s744 + $0x8] sm:$0xff]
        %v1882 = vld [vmem:[%s744 + $0x10] sm:$0xff]
        %v1883 = vld [vmem:[%s744 + $0x18] sm:$0xff]
        %v1884 = vld [vmem:[%s744 + $0x20] sm:$0xff]
        %v1885 = vld [vmem:[%s744 + $0x28] sm:$0xff]
        %v1886 = vld [vmem:[%s744 + $0x30] sm:$0xff]
        %v1887 = vld [vmem:[%s744 + $0x38] sm:$0xff]
        %v1888 = vld [vmem:[%s747] sm:$0x1]
        %v1890 = vlaneseq
        %v1891 = vshrl.u32 %v1890, 7
        %v1892 = vsub.s32 0, %v1891
        %v1893 = vrot.slane %v1888, %v1892
        %vm1895 = vcmask 523264
        %v1897 = vsel %vm1895, %v1878, 0
        %v1900 = vsel %vm1895, %v1879, 0
        %1902 = vmatprep.subr.mxu0 0.0
        %1903 = vmatpush1.msra.mxu0 %v1880
        %1904 = vmatprep.subr.mxu0 0.0
        %1905 = vmatpush1.msra.mxu0 %v1881
        %1906 = vmatprep.subr.mxu0 0.0
        %1907 = vmatpush1.msra.mxu0 %v1882
        %1908 = vmatprep.subr.mxu0 0.0
        %1909 = vmatpush1.msra.mxu0 %v1883
        %1910 = vmatprep.subr.mxu0 0.0
        %1911 = vmatpush1.msra.mxu0 %v1884
        %1912 = vmatprep.subr.mxu0 0.0
        %1913 = vmatpush1.msra.mxu0 %v1885
        %1914 = vmatprep.subr.mxu0 0.0
        %1915 = vmatpush1.msra.mxu0 %v1886
        %1916 = vmatprep.subr.mxu0 0.0
        %1917 = vmatpush1.msra.mxu0 %v1887
        %1918 = vmatprep.subr.mxu0 0.0
        %1919 = vmatpush1.msra.mxu0 0.0
        %1920 = vmatprep.subr.mxu0 0.0
        %1921 = vmatpush1.msra.mxu0 0.0
        %1922 = vmatprep.subr.mxu0 0.0
        %1923 = vmatpush1.msra.mxu0 0.0
        %1924 = vmatprep.subr.mxu0 0.0
        %1925 = vmatpush1.msra.mxu0 0.0
        %1926 = vmatprep.subr.mxu0 0.0
        %1927 = vmatpush1.msra.mxu0 0.0
        %1928 = vmatprep.subr.mxu0 0.0
        %1929 = vmatpush1.msra.mxu0 0.0
        %1930 = vmatprep.subr.mxu0 0.0
        %1931 = vmatpush1.msra.mxu0 0.0
        %1932 = vmatprep.subr.mxu0 0.0
        %1933 = vmatpush1.msra.mxu0 0.0
        %1934 = vmatprep.subr.mxu0 0.0
        %1935 = vmatpush1.msra.mxu0 0.0
        %1936 = vmatprep.subr.mxu0 0.0
        %1937 = vmatpush1.msra.mxu0 0.0
        %1938 = vmatprep.subr.mxu0 0.0
        %1939 = vmatpush1.msra.mxu0 0.0
        %1940 = vmatprep.subr.mxu0 0.0
        %1941 = vmatpush1.msra.mxu0 0.0
        %1942 = vmatprep.subr.mxu0 0.0
        %1943 = vmatpush1.msra.mxu0 0.0
        %1944 = vmatprep.subr.mxu0 0.0
        %1945 = vmatpush1.msra.mxu0 0.0
        %1946 = vmatprep.subr.mxu0 0.0
        %1947 = vmatpush1.msra.mxu0 0.0
        %1948 = vmatprep.subr.mxu0 0.0
        %1949 = vmatpush1.msra.mxu0 0.0
        %1950 = vmatprep.subr.mxu0 0.0
        %1951 = vmatpush1.msra.mxu0 0.0
        %1952 = vmatprep.subr.mxu0 0.0
        %1953 = vmatpush1.msra.mxu0 0.0
        %1954 = vmatprep.subr.mxu0 0.0
        %1955 = vmatpush1.msra.mxu0 0.0
        %1956 = vmatprep.subr.mxu0 0.0
        %1957 = vmatpush1.msra.mxu0 0.0
        %1958 = vmatprep.subr.mxu0 0.0
        %1959 = vmatpush1.msra.mxu0 0.0
        %1960 = vmatprep.subr.mxu0 0.0
        %1961 = vmatpush1.msra.mxu0 0.0
        %1962 = vmatprep.subr.mxu0 0.0
        %1963 = vmatpush1.msra.mxu0 0.0
        %1964 = vmatprep.subr.mxu0 0.0
        %1965 = vmatpush1.msra.mxu0 0.0
        %1966 = vmatprep.mubr.f32.mxu0 0.0
        %1967 = vmatmul.mubr.f32.gmra.mrb[0].mxu0 %v1897
        %v1968 = vpop.f32.mrb[0].mxu0
        %v1969 = vadd.f32 %v1893, %v1968
        %v1970 = vpop.f32.mrb[0].mxu0
        %1971 = vmatprep.mubr.f32.mxu0 0.0
        %1972 = vmatmul.mubr.f32.gmra.mrb[0].mxu0 %v1900
        %v1973 = vpop.f32.mrb[0].mxu0
        %v1974 = vadd.f32 %v1893, %v1973
        %v1975 = vpop.f32.mrb[0].mxu0
        %1976 = vdwg.mxu0
        %v1977 = vadd.f32 %v1768, %v1969
        %v1978 = vadd.f32 %v1769, %v1974
        %v1979 = vld [vmem:[%s750] sm:$0x1]
        %v1980 = vld [vmem:[%s753] sm:$0x1]
        %v1981 = vsel %vm837, %v1977, 0.0
        %1982 = vadd.xlane.f32.xlu0 %v1981
        %v1983 = vpop.xlane.xlu0 %1982
        %v1984 = vsel %vm837, %v1978, 0.0
        %1985 = vadd.xlane.f32.xlu0 %v1984
        %v1986 = vpop.xlane.xlu0 %1985
        %v1987 = vmul.f32 %v1983, %v1733
        %v1988 = vmul.f32 %v1986, %v1733
        %v1989 = vsub.f32 %v1977, %v1987
        %v1990 = vsub.f32 %v1978, %v1988
        %v1991 = vmul.f32 %v1989, %v1989
        %v1992 = vmul.f32 %v1990, %v1990
        %v1993 = vsel %vm837, %v1991, 0.0
        %1994 = vadd.xlane.f32.xlu0 %v1993
        %v1995 = vpop.xlane.xlu0 %1994
        %v1996 = vsel %vm837, %v1992, 0.0
        %1997 = vadd.xlane.f32.xlu0 %v1996
        %v1998 = vpop.xlane.xlu0 %1997
        %v1999 = vmul.f32 %v1995, %v1733
        %v2000 = vmul.f32 %v1998, %v1733
        %v2001 = vadd.f32 %v1999, 1e-12
        %v2002 = vadd.f32 %v2000, 1e-12
        %v2003 = vrsqrt.pop %v2001
        %v2004 = vrsqrt.pop %v2002
        %v2005 = vmul.f32 %v1989, %v2003
        %v2006 = vmul.f32 %v1990, %v2004
        %v2008 = vlaneseq
        %v2009 = vshrl.u32 %v2008, 7
        %v2010 = vsub.s32 0, %v2009
        %v2011 = vrot.slane %v1979, %v2010
        %v2013 = vmul.f32 %v2005, %v2011
        %v2014 = vmul.f32 %v2006, %v2011
        %v2016 = vlaneseq
        %v2017 = vshrl.u32 %v2016, 7
        %v2018 = vsub.s32 0, %v2017
        %v2019 = vrot.slane %v1980, %v2018
        %v2021 = vadd.f32 %v2013, %v2019
        %v2022 = vadd.f32 %v2014, %v2019
        %2023 = vst.msk [vmem:[#allocation2] sm:$0xff] %vm837, %v2021
        %2024 = vst.msk [vmem:[#allocation2 + $0x8] sm:$0xff] %vm837, %v2022
        %v2026 = vrot.slane %v2022, 7
        %vm2028 = vcmask 1040384
        %v2029 = vsel %vm2028, %v2021, %v2026
        %v2030 = vld [vmem:[#allocation3] sm:$0x3]
        %v2031 = vld [vmem:[%s759] sm:$0xff]
        %v2032 = vld [vmem:[%s759 + $0x8] sm:$0xff]
        %v2033 = vld [vmem:[%s759 + $0x10] sm:$0xff]
        %v2034 = vld [vmem:[%s759 + $0x18] sm:$0xff]
        %v2036 = vsel %vm837, %v2029, 0
        %2038 = vmatprep.subr.mxu0 0.0
        %2039 = vmatpush1.msra.mxu0 %v2031
        %2040 = vmatprep.subr.mxu0 0.0
        %2041 = vmatpush1.msra.mxu0 %v2032
        %2042 = vmatprep.subr.mxu0 0.0
        %2043 = vmatpush1.msra.mxu0 %v2033
        %2044 = vmatprep.subr.mxu0 0.0
        %2045 = vmatpush1.msra.mxu0 %v2034
        %2046 = vmatprep.subr.mxu0 0.0
        %2047 = vmatpush1.msra.mxu0 0.0
        %2048 = vmatprep.subr.mxu0 0.0
        %2049 = vmatpush1.msra.mxu0 0.0
        %2050 = vmatprep.subr.mxu0 0.0
        %2051 = vmatpush1.msra.mxu0 0.0
        %2052 = vmatprep.subr.mxu0 0.0
        %2053 = vmatpush1.msra.mxu0 0.0
        %2054 = vmatprep.subr.mxu0 0.0
        %2055 = vmatpush1.msra.mxu0 0.0
        %2056 = vmatprep.subr.mxu0 0.0
        %2057 = vmatpush1.msra.mxu0 0.0
        %2058 = vmatprep.subr.mxu0 0.0
        %2059 = vmatpush1.msra.mxu0 0.0
        %2060 = vmatprep.subr.mxu0 0.0
        %2061 = vmatpush1.msra.mxu0 0.0
        %2062 = vmatprep.subr.mxu0 0.0
        %2063 = vmatpush1.msra.mxu0 0.0
        %2064 = vmatprep.subr.mxu0 0.0
        %2065 = vmatpush1.msra.mxu0 0.0
        %2066 = vmatprep.subr.mxu0 0.0
        %2067 = vmatpush1.msra.mxu0 0.0
        %2068 = vmatprep.subr.mxu0 0.0
        %2069 = vmatpush1.msra.mxu0 0.0
        %2070 = vmatprep.subr.mxu0 0.0
        %2071 = vmatpush1.msra.mxu0 0.0
        %2072 = vmatprep.subr.mxu0 0.0
        %2073 = vmatpush1.msra.mxu0 0.0
        %2074 = vmatprep.subr.mxu0 0.0
        %2075 = vmatpush1.msra.mxu0 0.0
        %2076 = vmatprep.subr.mxu0 0.0
        %2077 = vmatpush1.msra.mxu0 0.0
        %2078 = vmatprep.subr.mxu0 0.0
        %2079 = vmatpush1.msra.mxu0 0.0
        %2080 = vmatprep.subr.mxu0 0.0
        %2081 = vmatpush1.msra.mxu0 0.0
        %2082 = vmatprep.subr.mxu0 0.0
        %2083 = vmatpush1.msra.mxu0 0.0
        %2084 = vmatprep.subr.mxu0 0.0
        %2085 = vmatpush1.msra.mxu0 0.0
        %2086 = vmatprep.subr.mxu0 0.0
        %2087 = vmatpush1.msra.mxu0 0.0
        %2088 = vmatprep.subr.mxu0 0.0
        %2089 = vmatpush1.msra.mxu0 0.0
        %2090 = vmatprep.subr.mxu0 0.0
        %2091 = vmatpush1.msra.mxu0 0.0
        %2092 = vmatprep.subr.mxu0 0.0
        %2093 = vmatpush1.msra.mxu0 0.0
        %2094 = vmatprep.subr.mxu0 0.0
        %2095 = vmatpush1.msra.mxu0 0.0
        %2096 = vmatprep.subr.mxu0 0.0
        %2097 = vmatpush1.msra.mxu0 0.0
        %2098 = vmatprep.subr.mxu0 0.0
        %2099 = vmatpush1.msra.mxu0 0.0
        %2100 = vmatprep.subr.mxu0 0.0
        %2101 = vmatpush1.msra.mxu0 0.0
        %2102 = vmatprep.mubr.f32.mxu0 0.0
        %2103 = vmatmul.mubr.f32.gmra.mrb[0].mxu0 %v2036
        %v2104 = vpop.f32.mrb[0].mxu0
        %v2105 = vadd.f32 0.0, %v2104
        %v2106 = vpop.f32.mrb[0].mxu0
        %2107 = vdwg.mxu0
        %v2108 = vadd.f32 %v2030, %v2105
        %2109 = vst [vmem:[#allocation3] sm:$0x3] %v2108
        // Predicated region
        $region97: #{vdet_forward.1} parent=91 // pred_check
          %p2110 = pneg %p488
        $region98: #{vdet_forward.1} parent=91 // pred_check_branch
          %2112 = sbr.rel (%p2110) target = $region100
        $region99: #{vdet_forward.1} parent=91 // pred_region
          %s2114 = ssub.s32 32, 32
          %2115 = vsyncadd [#allocation4], %s2114
          %s2117 = sshll.u32 [#allocation3], 4
          %s2118 = int_to_ptr.vmem [resolvable:$true] %s2117
          %2120 = dma.vmem_to_hbm [thread:$0]  %s2118, 32, %s18, [#allocation4]
        $region100: #{vdet_forward.1} parent=91 // pred_fallthru
          _
        // Predicated region
        $region101: #{vdet_forward.1} parent=91 // pred_check
          %p2121 = pneg %p488
        $region102: #{vdet_forward.1} parent=91 // pred_check_branch
          %2123 = sbr.rel (%p2121) target = $region104
        $region103: #{vdet_forward.1} parent=91 // pred_region
          %2124 = dma.done [#allocation4], 32
        $region104: #{vdet_forward.1} parent=91 // pred_fallthru
          _
      $region92: #{vdet_forward.1} parent=5 // pred_fallthru
        _
      %p2125 = scmp.le.s32.totalorder 2, %s25
      // Predicated region
      $region105: #{vdet_forward.1} parent=5 // pred_check
        %p2126 = pneg %p2125
      $region106: #{vdet_forward.1} parent=5 // pred_check_branch
        %2128 = sbr.rel (%p2126) target = $region108
      $region107: #{vdet_forward.1} parent=5 // pred_region
        %s2129 = ssub.s32 %s25, 2
      $region108: #{vdet_forward.1} parent=5 // pred_fallthru
        _
    $region6: #{vdet_forward.1} parent=1 // loop_footer
      %s29 = sadd.s32 1, %s25
    $region7: #{vdet_forward.1} parent=1 // loop_footer_branch
      %24 = sbr.rel target = $region3
    $region8: #{vdet_forward.1} parent=1 // loop_exit
      _
    %2130 = vsyncpa [#allocation4], 1
    %s2131 = scalar_lea.sflag [#allocation4], 1
    %2132 = vsyncpa %s2131, 1

</llo_original>
